<compile_context>
chip_gen: v5e
topology: v5e:2x2
jax: 0.10.0
libtpu: 0.0.40
codegen_flags: <defaults>
</compile_context>

<pallas_src>
import functools

import jax
import jax.numpy as jnp
from jax.experimental import pallas as pl
from jax.experimental.pallas import tpu as pltpu


# ----------------------------------------------------------------------------
# Pallas kernel: backward (reverse-direction) masked LSTM -> hidden[-1]
# ----------------------------------------------------------------------------
def text_rnn_kernel(
    x_ref,       # (T*Bp, D_in) f32   embedded text, time-major rows (row = t*Bp + b)
    len_ref,     # (Bp, 1)      i32   valid sequence lengths (0 for padded rows)
    w_ih_ref,    # (D_in, 4*Hp) f32   LSTM reverse weight_ih, transposed, H-padded
    w_hh_ref,    # (Hp, 4*Hp)   f32   LSTM reverse weight_hh, transposed, H-padded
    b_ref,       # (1, 4*Hp)    f32   b_ih + b_hh, H-padded
    out_ref,     # (Bp, Hp)     f32   hidden[-1]
    gx_ref,      # (T*Bp, 4*Hp) f32   VMEM scratch: hoisted input projection
):
    Bp = len_ref.shape[0]
    Hp = w_hh_ref.shape[0]
    T = x_ref.shape[0] // Bp

    # (1) Hoisted input projection (+ bias): one big MXU matmul for all T steps,
    #     removing one dependent matmul and the bias add from the serial chain.
    gx_ref[...] = (
        jnp.dot(x_ref[...], w_ih_ref[...], preferred_element_type=jnp.float32)
        + b_ref[...]
    )

    # (2) Hoisted full-width validity operand: no per-step broadcast_in_dim.
    lengths_b = jnp.broadcast_to(len_ref[...], (Bp, Hp))  # (Bp, Hp) int32

    w_hh = w_hh_ref[...]

    def step(i, carry):
        h, c = carry
        t = T - 1 - i                               # backward direction: t = T-1 .. 0
        row = pl.multiple_of(t * Bp, Bp)            # sublane-aligned dynamic slice
        gates = gx_ref[pl.ds(row, Bp), :] + jnp.dot(
            h, w_hh, preferred_element_type=jnp.float32
        )                                           # (Bp, 4Hp), gate order i|f|g|o
        # Hp is a multiple of 128 -> each gate slice is whole-vreg (no sub-lane extract)
        i_g = jax.nn.sigmoid(gates[:, 0:Hp])
        f_g = jax.nn.sigmoid(gates[:, Hp:2 * Hp])
        g_g = jnp.tanh(gates[:, 2 * Hp:3 * Hp])
        o_g = jax.nn.sigmoid(gates[:, 3 * Hp:4 * Hp])
        c_new = f_g * c + i_g * g_g
        h_new = o_g * jnp.tanh(c_new)
        # packed-sequence semantics: only update while t is inside the valid region
        valid = lengths_b > t
        h = jnp.where(valid, h_new, h)
        c = jnp.where(valid, c_new, c)
        return h, c

    h0 = jnp.zeros((Bp, Hp), jnp.float32)
    c0 = jnp.zeros((Bp, Hp), jnp.float32)
    # Fully unrolled serial recurrence (small static T) so the LLO scheduler can
    # overlap the h@w_hh MXU latency with the previous step's EUP/VPU work.
    # (A dynamic start at T - max(lengths) would skip fully-masked steps but would
    #  forbid unrolling; at max(lengths)==T it buys nothing, so unroll wins here.)
    h_final, _ = jax.lax.fori_loop(0, T, step, (h0, c0), unroll=True)

    out_ref[...] = h_final                           # lane-dense (Bp, Hp) store


# ----------------------------------------------------------------------------
# Wrapper: single embedding gather (glue) + shape padding + pallas_call
# ----------------------------------------------------------------------------
def _pad_gate_cols(w, h, hp):
    """Zero-pad each of the 4 gate blocks (width h) along the last axis to width hp."""
    if h == hp:
        return w
    blocks = [w[..., g * h:(g + 1) * h] for g in range(4)]
    pad = [(0, 0)] * (w.ndim - 1) + [(0, hp - h)]
    return jnp.concatenate([jnp.pad(b, pad) for b in blocks], axis=-1)


def text_rnn_forward(text_ids, lengths, params):
    B, T = text_ids.shape
    D_in = params["w_ih_T"].shape[0]
    H = params["w_hh_T"].shape[0]

    Bp = ((B + 7) // 8) * 8            # sublane-aligned batch
    Hp = ((H + 127) // 128) * 128      # lane-aligned hidden (whole-vreg gate slices)

    # Single fused table gather, directly time-major: (T, B, D_in).
    x_tm = params["emb_all"][text_ids.T].astype(jnp.float32)
    # TODO(synk): F.dropout(p=0.1) on the embeddings is treated as identity (eval mode).
    if Bp != B:
        x_tm = jnp.pad(x_tm, ((0, 0), (0, Bp - B), (0, 0)))
    x_flat = x_tm.reshape(T * Bp, D_in)

    len_col = jnp.pad(lengths.astype(jnp.int32), (0, Bp - B)).reshape(Bp, 1)

    # H-padded LSTM weights (zero pad per gate block => padded hidden units stay 0).
    w_ih_p = _pad_gate_cols(params["w_ih_T"], H, Hp)                     # (D_in, 4Hp)
    w_hh_p = jnp.pad(_pad_gate_cols(params["w_hh_T"], H, Hp),
                     ((0, Hp - H), (0, 0)))                              # (Hp, 4Hp)
    b_p = _pad_gate_cols(params["b_lstm"], H, Hp)                        # (1, 4Hp)

    vmem = pl.BlockSpec(memory_space=pltpu.MemorySpace.VMEM)
    h_pad = pl.pallas_call(
        text_rnn_kernel,
        out_shape=jax.ShapeDtypeStruct((Bp, Hp), jnp.float32),
        in_specs=[vmem] * 5,
        out_specs=vmem,
        scratch_shapes=[pltpu.VMEM((T * Bp, 4 * Hp), jnp.float32)],
    )(x_flat, len_col, w_ih_p, w_hh_p, b_p)

    # hidden[-1] of the bidirectional LSTM == backward-direction final hidden state
    return h_pad[:B, :H]


# ----------------------------------------------------------------------------
# Pure-JAX reference (same math, unpadded) for a correctness check
# ----------------------------------------------------------------------------
def reference_forward(text_ids, lengths, params):
    x = params["emb_all"][text_ids].astype(jnp.float32)     # (B, T, D_in)
    B, T, _ = x.shape
    H = params["w_hh_T"].shape[0]
    h = jnp.zeros((B, H), jnp.float32)
    c = jnp.zeros((B, H), jnp.float32)
    for t in range(T - 1, -1, -1):
        gates = x[:, t, :] @ params["w_ih_T"] + h @ params["w_hh_T"] + params["b_lstm"]
        i_g = jax.nn.sigmoid(gates[:, :H])
        f_g = jax.nn.sigmoid(gates[:, H:2 * H])
        g_g = jnp.tanh(gates[:, 2 * H:3 * H])
        o_g = jax.nn.sigmoid(gates[:, 3 * H:])
        c_new = f_g * c + i_g * g_g
        h_new = o_g * jnp.tanh(c_new)
        mask = lengths[:, None] > t
        h = jnp.where(mask, h_new, h)
        c = jnp.where(mask, c_new, c)
    return h


# ----------------------------------------------------------------------------
# Deterministic parameter construction
# ----------------------------------------------------------------------------
def make_params(key, *, vocab, text_dim, short_emb_dim, hidden):
    d_in = text_dim + short_emb_dim
    ks = jax.random.split(key, 5)

    def rnd(k, shape, scale=0.1):
        return (jax.random.normal(k, shape) * scale).astype(jnp.float32)

    emb = rnd(ks[0], (vocab, text_dim), 0.5)
    short = rnd(ks[1], (vocab, short_emb_dim), 0.5)
    return {
        # pre-concatenated embedding + short_embedding table (one gather, no concat op)
        "emb_all": jnp.concatenate([emb, short], axis=1),
        # LSTM reverse-direction weights, pre-transposed (in, 4H), gate order i|f|g|o
        "w_ih_T": rnd(ks[2], (d_in, 4 * hidden)),
        "w_hh_T": rnd(ks[3], (hidden, 4 * hidden)),
        "b_lstm": rnd(ks[4], (1, 4 * hidden)),     # b_ih + b_hh combined
    }


if __name__ == "__main__":
    B, T = 4, 8
    VOCAB = 50
    TEXT_DIM, SHORT_EMB_DIM = 32, 8
    HIDDEN = 32

    key = jax.random.PRNGKey(0)
    k_params, k_ids = jax.random.split(key, 2)

    params = make_params(k_params, vocab=VOCAB, text_dim=TEXT_DIM,
                         short_emb_dim=SHORT_EMB_DIM, hidden=HIDDEN)

    text_ids = jax.random.randint(k_ids, (B, T), 0, VOCAB, dtype=jnp.int32)
    lengths = jnp.array([8, 5, 3, 6], dtype=jnp.int32)      # valid lengths <= T

    run = jax.jit(functools.partial(text_rnn_forward, params=params))
    out = jax.block_until_ready(run(text_ids, lengths))

    ref = jax.block_until_ready(reference_forward(text_ids, lengths, params))

    assert out.shape == (B, HIDDEN), out.shape
    assert jnp.allclose(out, ref, rtol=1e-5, atol=1e-5), (out, ref)

    print("KERNEL_OK")
</pallas_src>

<mosaic_0001>
module attributes {stable_mosaic.version = 11 : i64} {
  func.func @text_rnn_kernel(%arg0: memref<64x40xf32, #tpu.memory_space<vmem>>, %arg1: memref<8x1xi32, #tpu.memory_space<vmem>>, %arg2: memref<40x512xf32, #tpu.memory_space<vmem>>, %arg3: memref<128x512xf32, #tpu.memory_space<vmem>>, %arg4: memref<1x512xf32, #tpu.memory_space<vmem>>, %arg5: memref<8x128xf32, #tpu.memory_space<vmem>>, %arg6: memref<64x512xf32, #tpu.memory_space<vmem>>) attributes {dimension_semantics = [], scalar_prefetch = 0 : i64, scratch_operands = 1 : i64, tpu.core_type = #tpu.core_type<tc>} {
    %c0 = arith.constant 0 : index
    %c0_0 = arith.constant 0 : index
    %0 = vector.load %arg0[%c0, %c0_0] : memref<64x40xf32, #tpu.memory_space<vmem>>, vector<64x40xf32>
    %c0_1 = arith.constant 0 : index
    %c0_2 = arith.constant 0 : index
    %1 = vector.load %arg2[%c0_1, %c0_2] : memref<40x512xf32, #tpu.memory_space<vmem>>, vector<40x512xf32>
    %cst = arith.constant dense<0.000000e+00> : vector<64x512xf32>
    %2 = tpu.matmul %0, %1, %cst {dimension_numbers = #tpu.dot_dimension_numbers<[1], [0], [0], [1], [0, 0, 1, 1], [], []>} : vector<64x40xf32>, vector<40x512xf32>, vector<64x512xf32> -> vector<64x512xf32>
    %c0_3 = arith.constant 0 : index
    %c0_4 = arith.constant 0 : index
    %3 = vector.load %arg4[%c0_3, %c0_4] : memref<1x512xf32, #tpu.memory_space<vmem>>, vector<1x512xf32>
    %4 = vector.broadcast %3 : vector<1x512xf32> to vector<64x512xf32>
    %5 = arith.addf %2, %4 : vector<64x512xf32>
    %c0_5 = arith.constant 0 : index
    %c0_6 = arith.constant 0 : index
    %6 = vector.load %arg6[%c0_5, %c0_6] : memref<64x512xf32, #tpu.memory_space<vmem>>, vector<64x512xf32>
    tpu.vector_store %arg6[%c0_5, %c0_6], %5 {strides = array<i32>} : memref<64x512xf32, #tpu.memory_space<vmem>>, vector<64x512xf32>,
    %c0_7 = arith.constant 0 : index
    %c0_8 = arith.constant 0 : index
    %7 = vector.load %arg1[%c0_7, %c0_8] : memref<8x1xi32, #tpu.memory_space<vmem>>, vector<8x1xi32>
    %8 = vector.shape_cast %7 : vector<8x1xi32> to vector<8x1xi32>
    %9 = vector.broadcast %8 : vector<8x1xi32> to vector<8x128xi32>
    %c0_9 = arith.constant 0 : index
    %c0_10 = arith.constant 0 : index
    %10 = vector.load %arg3[%c0_9, %c0_10] : memref<128x512xf32, #tpu.memory_space<vmem>>, vector<128x512xf32>
    %cst_11 = arith.constant 0.000000e+00 : f32
    %11 = vector.broadcast %cst_11 : f32 to vector<8x128xf32>
    %cst_12 = arith.constant 0.000000e+00 : f32
    %12 = vector.broadcast %cst_12 : f32 to vector<8x128xf32>
    %c0_i32 = arith.constant 0 : i32
    %c7_i32 = arith.constant 7 : i32
    %13 = arith.subi %c7_i32, %c0_i32 : i32
    %c8_i32 = arith.constant 8 : i32
    %14 = arith.muli %13, %c8_i32 : i32
    %15 = tpu.assume_multiple %14, 8 : i32
    %16 = arith.index_cast %15 : i32 to index
    %c0_13 = arith.constant 0 : index
    %17 = vector.load %arg6[%16, %c0_13] : memref<64x512xf32, #tpu.memory_space<vmem>>, vector<8x512xf32>
    %cst_14 = arith.constant dense<0.000000e+00> : vector<8x512xf32>
    %18 = tpu.matmul %11, %10, %cst_14 {dimension_numbers = #tpu.dot_dimension_numbers<[1], [0], [0], [1], [0, 0, 1, 1], [], []>} : vector<8x128xf32>, vector<128x512xf32>, vector<8x512xf32> -> vector<8x512xf32>
    %19 = arith.addf %17, %18 : vector<8x512xf32>
    %20 = vector.extract_strided_slice %19 {offsets = [0, 0], sizes = [8, 128], strides = [1, 1]} : vector<8x512xf32> to vector<8x128xf32>
    %21 = arith.negf %20 : vector<8x128xf32>
    %22 = math.exp %21 : vector<8x128xf32>
    %cst_15 = arith.constant 1.000000e+00 : f32
    %23 = vector.broadcast %cst_15 : f32 to vector<8x128xf32>
    %24 = arith.addf %23, %22 : vector<8x128xf32>
    %25 = arith.divf %23, %24 : vector<8x128xf32>
    %26 = vector.extract_strided_slice %19 {offsets = [0, 128], sizes = [8, 128], strides = [1, 1]} : vector<8x512xf32> to vector<8x128xf32>
    %27 = arith.negf %26 : vector<8x128xf32>
    %28 = math.exp %27 : vector<8x128xf32>
    %cst_16 = arith.constant 1.000000e+00 : f32
    %29 = vector.broadcast %cst_16 : f32 to vector<8x128xf32>
    %30 = arith.addf %29, %28 : vector<8x128xf32>
    %31 = arith.divf %29, %30 : vector<8x128xf32>
    %32 = vector.extract_strided_slice %19 {offsets = [0, 256], sizes = [8, 128], strides = [1, 1]} : vector<8x512xf32> to vector<8x128xf32>
    %33 = math.tanh %32 : vector<8x128xf32>
    %34 = vector.extract_strided_slice %19 {offsets = [0, 384], sizes = [8, 128], strides = [1, 1]} : vector<8x512xf32> to vector<8x128xf32>
    %35 = arith.negf %34 : vector<8x128xf32>
    %36 = math.exp %35 : vector<8x128xf32>
    %cst_17 = arith.constant 1.000000e+00 : f32
    %37 = vector.broadcast %cst_17 : f32 to vector<8x128xf32>
    %38 = arith.addf %37, %36 : vector<8x128xf32>
    %39 = arith.divf %37, %38 : vector<8x128xf32>
    %40 = arith.mulf %31, %12 : vector<8x128xf32>
    %41 = arith.mulf %25, %33 : vector<8x128xf32>
    %42 = arith.addf %40, %41 : vector<8x128xf32>
    %43 = math.tanh %42 : vector<8x128xf32>
    %44 = arith.mulf %39, %43 : vector<8x128xf32>
    %45 = vector.broadcast %13 : i32 to vector<8x128xi32>
    %46 = arith.cmpi sgt, %9, %45 : vector<8x128xi32>
    %47 = arith.select %46, %44, %11 : vector<8x128xi1>, vector<8x128xf32>
    %48 = arith.select %46, %42, %12 : vector<8x128xi1>, vector<8x128xf32>
    %c1_i32 = arith.constant 1 : i32
    %c7_i32_18 = arith.constant 7 : i32
    %49 = arith.subi %c7_i32_18, %c1_i32 : i32
    %c8_i32_19 = arith.constant 8 : i32
    %50 = arith.muli %49, %c8_i32_19 : i32
    %51 = tpu.assume_multiple %50, 8 : i32
    %52 = arith.index_cast %51 : i32 to index
    %c0_20 = arith.constant 0 : index
    %53 = vector.load %arg6[%52, %c0_20] : memref<64x512xf32, #tpu.memory_space<vmem>>, vector<8x512xf32>
    %cst_21 = arith.constant dense<0.000000e+00> : vector<8x512xf32>
    %54 = tpu.matmul %47, %10, %cst_21 {dimension_numbers = #tpu.dot_dimension_numbers<[1], [0], [0], [1], [0, 0, 1, 1], [], []>} : vector<8x128xf32>, vector<128x512xf32>, vector<8x512xf32> -> vector<8x512xf32>
    %55 = arith.addf %53, %54 : vector<8x512xf32>
    %56 = vector.extract_strided_slice %55 {offsets = [0, 0], sizes = [8, 128], strides = [1, 1]} : vector<8x512xf32> to vector<8x128xf32>
    %57 = arith.negf %56 : vector<8x128xf32>
    %58 = math.exp %57 : vector<8x128xf32>
    %cst_22 = arith.constant 1.000000e+00 : f32
    %59 = vector.broadcast %cst_22 : f32 to vector<8x128xf32>
    %60 = arith.addf %59, %58 : vector<8x128xf32>
    %61 = arith.divf %59, %60 : vector<8x128xf32>
    %62 = vector.extract_strided_slice %55 {offsets = [0, 128], sizes = [8, 128], strides = [1, 1]} : vector<8x512xf32> to vector<8x128xf32>
    %63 = arith.negf %62 : vector<8x128xf32>
    %64 = math.exp %63 : vector<8x128xf32>
    %cst_23 = arith.constant 1.000000e+00 : f32
    %65 = vector.broadcast %cst_23 : f32 to vector<8x128xf32>
    %66 = arith.addf %65, %64 : vector<8x128xf32>
    %67 = arith.divf %65, %66 : vector<8x128xf32>
    %68 = vector.extract_strided_slice %55 {offsets = [0, 256], sizes = [8, 128], strides = [1, 1]} : vector<8x512xf32> to vector<8x128xf32>
    %69 = math.tanh %68 : vector<8x128xf32>
    %70 = vector.extract_strided_slice %55 {offsets = [0, 384], sizes = [8, 128], strides = [1, 1]} : vector<8x512xf32> to vector<8x128xf32>
    %71 = arith.negf %70 : vector<8x128xf32>
    %72 = math.exp %71 : vector<8x128xf32>
    %cst_24 = arith.constant 1.000000e+00 : f32
    %73 = vector.broadcast %cst_24 : f32 to vector<8x128xf32>
    %74 = arith.addf %73, %72 : vector<8x128xf32>
    %75 = arith.divf %73, %74 : vector<8x128xf32>
    %76 = arith.mulf %67, %48 : vector<8x128xf32>
    %77 = arith.mulf %61, %69 : vector<8x128xf32>
    %78 = arith.addf %76, %77 : vector<8x128xf32>
    %79 = math.tanh %78 : vector<8x128xf32>
    %80 = arith.mulf %75, %79 : vector<8x128xf32>
    %81 = vector.broadcast %49 : i32 to vector<8x128xi32>
    %82 = arith.cmpi sgt, %9, %81 : vector<8x128xi32>
    %83 = arith.select %82, %80, %47 : vector<8x128xi1>, vector<8x128xf32>
    %84 = arith.select %82, %78, %48 : vector<8x128xi1>, vector<8x128xf32>
    %c2_i32 = arith.constant 2 : i32
    %c7_i32_25 = arith.constant 7 : i32
    %85 = arith.subi %c7_i32_25, %c2_i32 : i32
    %c8_i32_26 = arith.constant 8 : i32
    %86 = arith.muli %85, %c8_i32_26 : i32
    %87 = tpu.assume_multiple %86, 8 : i32
    %88 = arith.index_cast %87 : i32 to index
    %c0_27 = arith.constant 0 : index
    %89 = vector.load %arg6[%88, %c0_27] : memref<64x512xf32, #tpu.memory_space<vmem>>, vector<8x512xf32>
    %cst_28 = arith.constant dense<0.000000e+00> : vector<8x512xf32>
    %90 = tpu.matmul %83, %10, %cst_28 {dimension_numbers = #tpu.dot_dimension_numbers<[1], [0], [0], [1], [0, 0, 1, 1], [], []>} : vector<8x128xf32>, vector<128x512xf32>, vector<8x512xf32> -> vector<8x512xf32>
    %91 = arith.addf %89, %90 : vector<8x512xf32>
    %92 = vector.extract_strided_slice %91 {offsets = [0, 0], sizes = [8, 128], strides = [1, 1]} : vector<8x512xf32> to vector<8x128xf32>
    %93 = arith.negf %92 : vector<8x128xf32>
    %94 = math.exp %93 : vector<8x128xf32>
    %cst_29 = arith.constant 1.000000e+00 : f32
    %95 = vector.broadcast %cst_29 : f32 to vector<8x128xf32>
    %96 = arith.addf %95, %94 : vector<8x128xf32>
    %97 = arith.divf %95, %96 : vector<8x128xf32>
    %98 = vector.extract_strided_slice %91 {offsets = [0, 128], sizes = [8, 128], strides = [1, 1]} : vector<8x512xf32> to vector<8x128xf32>
    %99 = arith.negf %98 : vector<8x128xf32>
    %100 = math.exp %99 : vector<8x128xf32>
    %cst_30 = arith.constant 1.000000e+00 : f32
    %101 = vector.broadcast %cst_30 : f32 to vector<8x128xf32>
    %102 = arith.addf %101, %100 : vector<8x128xf32>
    %103 = arith.divf %101, %102 : vector<8x128xf32>
    %104 = vector.extract_strided_slice %91 {offsets = [0, 256], sizes = [8, 128], strides = [1, 1]} : vector<8x512xf32> to vector<8x128xf32>
    %105 = math.tanh %104 : vector<8x128xf32>
    %106 = vector.extract_strided_slice %91 {offsets = [0, 384], sizes = [8, 128], strides = [1, 1]} : vector<8x512xf32> to vector<8x128xf32>
    %107 = arith.negf %106 : vector<8x128xf32>
    %108 = math.exp %107 : vector<8x128xf32>
    %cst_31 = arith.constant 1.000000e+00 : f32
    %109 = vector.broadcast %cst_31 : f32 to vector<8x128xf32>
    %110 = arith.addf %109, %108 : vector<8x128xf32>
    %111 = arith.divf %109, %110 : vector<8x128xf32>
    %112 = arith.mulf %103, %84 : vector<8x128xf32>
    %113 = arith.mulf %97, %105 : vector<8x128xf32>
    %114 = arith.addf %112, %113 : vector<8x128xf32>
    %115 = math.tanh %114 : vector<8x128xf32>
    %116 = arith.mulf %111, %115 : vector<8x128xf32>
    %117 = vector.broadcast %85 : i32 to vector<8x128xi32>
    %118 = arith.cmpi sgt, %9, %117 : vector<8x128xi32>
    %119 = arith.select %118, %116, %83 : vector<8x128xi1>, vector<8x128xf32>
    %120 = arith.select %118, %114, %84 : vector<8x128xi1>, vector<8x128xf32>
    %c3_i32 = arith.constant 3 : i32
    %c7_i32_32 = arith.constant 7 : i32
    %121 = arith.subi %c7_i32_32, %c3_i32 : i32
    %c8_i32_33 = arith.constant 8 : i32
    %122 = arith.muli %121, %c8_i32_33 : i32
    %123 = tpu.assume_multiple %122, 8 : i32
    %124 = arith.index_cast %123 : i32 to index
    %c0_34 = arith.constant 0 : index
    %125 = vector.load %arg6[%124, %c0_34] : memref<64x512xf32, #tpu.memory_space<vmem>>, vector<8x512xf32>
    %cst_35 = arith.constant dense<0.000000e+00> : vector<8x512xf32>
    %126 = tpu.matmul %119, %10, %cst_35 {dimension_numbers = #tpu.dot_dimension_numbers<[1], [0], [0], [1], [0, 0, 1, 1], [], []>} : vector<8x128xf32>, vector<128x512xf32>, vector<8x512xf32> -> vector<8x512xf32>
    %127 = arith.addf %125, %126 : vector<8x512xf32>
    %128 = vector.extract_strided_slice %127 {offsets = [0, 0], sizes = [8, 128], strides = [1, 1]} : vector<8x512xf32> to vector<8x128xf32>
    %129 = arith.negf %128 : vector<8x128xf32>
    %130 = math.exp %129 : vector<8x128xf32>
    %cst_36 = arith.constant 1.000000e+00 : f32
    %131 = vector.broadcast %cst_36 : f32 to vector<8x128xf32>
    %132 = arith.addf %131, %130 : vector<8x128xf32>
    %133 = arith.divf %131, %132 : vector<8x128xf32>
    %134 = vector.extract_strided_slice %127 {offsets = [0, 128], sizes = [8, 128], strides = [1, 1]} : vector<8x512xf32> to vector<8x128xf32>
    %135 = arith.negf %134 : vector<8x128xf32>
    %136 = math.exp %135 : vector<8x128xf32>
    %cst_37 = arith.constant 1.000000e+00 : f32
    %137 = vector.broadcast %cst_37 : f32 to vector<8x128xf32>
    %138 = arith.addf %137, %136 : vector<8x128xf32>
    %139 = arith.divf %137, %138 : vector<8x128xf32>
    %140 = vector.extract_strided_slice %127 {offsets = [0, 256], sizes = [8, 128], strides = [1, 1]} : vector<8x512xf32> to vector<8x128xf32>
    %141 = math.tanh %140 : vector<8x128xf32>
    %142 = vector.extract_strided_slice %127 {offsets = [0, 384], sizes = [8, 128], strides = [1, 1]} : vector<8x512xf32> to vector<8x128xf32>
    %143 = arith.negf %142 : vector<8x128xf32>
    %144 = math.exp %143 : vector<8x128xf32>
    %cst_38 = arith.constant 1.000000e+00 : f32
    %145 = vector.broadcast %cst_38 : f32 to vector<8x128xf32>
    %146 = arith.addf %145, %144 : vector<8x128xf32>
    %147 = arith.divf %145, %146 : vector<8x128xf32>
    %148 = arith.mulf %139, %120 : vector<8x128xf32>
    %149 = arith.mulf %133, %141 : vector<8x128xf32>
    %150 = arith.addf %148, %149 : vector<8x128xf32>
    %151 = math.tanh %150 : vector<8x128xf32>
    %152 = arith.mulf %147, %151 : vector<8x128xf32>
    %153 = vector.broadcast %121 : i32 to vector<8x128xi32>
    %154 = arith.cmpi sgt, %9, %153 : vector<8x128xi32>
    %155 = arith.select %154, %152, %119 : vector<8x128xi1>, vector<8x128xf32>
    %156 = arith.select %154, %150, %120 : vector<8x128xi1>, vector<8x128xf32>
    %c4_i32 = arith.constant 4 : i32
    %c7_i32_39 = arith.constant 7 : i32
    %157 = arith.subi %c7_i32_39, %c4_i32 : i32
    %c8_i32_40 = arith.constant 8 : i32
    %158 = arith.muli %157, %c8_i32_40 : i32
    %159 = tpu.assume_multiple %158, 8 : i32
    %160 = arith.index_cast %159 : i32 to index
    %c0_41 = arith.constant 0 : index
    %161 = vector.load %arg6[%160, %c0_41] : memref<64x512xf32, #tpu.memory_space<vmem>>, vector<8x512xf32>
    %cst_42 = arith.constant dense<0.000000e+00> : vector<8x512xf32>
    %162 = tpu.matmul %155, %10, %cst_42 {dimension_numbers = #tpu.dot_dimension_numbers<[1], [0], [0], [1], [0, 0, 1, 1], [], []>} : vector<8x128xf32>, vector<128x512xf32>, vector<8x512xf32> -> vector<8x512xf32>
    %163 = arith.addf %161, %162 : vector<8x512xf32>
    %164 = vector.extract_strided_slice %163 {offsets = [0, 0], sizes = [8, 128], strides = [1, 1]} : vector<8x512xf32> to vector<8x128xf32>
    %165 = arith.negf %164 : vector<8x128xf32>
    %166 = math.exp %165 : vector<8x128xf32>
    %cst_43 = arith.constant 1.000000e+00 : f32
    %167 = vector.broadcast %cst_43 : f32 to vector<8x128xf32>
    %168 = arith.addf %167, %166 : vector<8x128xf32>
    %169 = arith.divf %167, %168 : vector<8x128xf32>
    %170 = vector.extract_strided_slice %163 {offsets = [0, 128], sizes = [8, 128], strides = [1, 1]} : vector<8x512xf32> to vector<8x128xf32>
    %171 = arith.negf %170 : vector<8x128xf32>
    %172 = math.exp %171 : vector<8x128xf32>
    %cst_44 = arith.constant 1.000000e+00 : f32
    %173 = vector.broadcast %cst_44 : f32 to vector<8x128xf32>
    %174 = arith.addf %173, %172 : vector<8x128xf32>
    %175 = arith.divf %173, %174 : vector<8x128xf32>
    %176 = vector.extract_strided_slice %163 {offsets = [0, 256], sizes = [8, 128], strides = [1, 1]} : vector<8x512xf32> to vector<8x128xf32>
    %177 = math.tanh %176 : vector<8x128xf32>
    %178 = vector.extract_strided_slice %163 {offsets = [0, 384], sizes = [8, 128], strides = [1, 1]} : vector<8x512xf32> to vector<8x128xf32>
    %179 = arith.negf %178 : vector<8x128xf32>
    %180 = math.exp %179 : vector<8x128xf32>
    %cst_45 = arith.constant 1.000000e+00 : f32
    %181 = vector.broadcast %cst_45 : f32 to vector<8x128xf32>
    %182 = arith.addf %181, %180 : vector<8x128xf32>
    %183 = arith.divf %181, %182 : vector<8x128xf32>
    %184 = arith.mulf %175, %156 : vector<8x128xf32>
    %185 = arith.mulf %169, %177 : vector<8x128xf32>
    %186 = arith.addf %184, %185 : vector<8x128xf32>
    %187 = math.tanh %186 : vector<8x128xf32>
    %188 = arith.mulf %183, %187 : vector<8x128xf32>
    %189 = vector.broadcast %157 : i32 to vector<8x128xi32>
    %190 = arith.cmpi sgt, %9, %189 : vector<8x128xi32>
    %191 = arith.select %190, %188, %155 : vector<8x128xi1>, vector<8x128xf32>
    %192 = arith.select %190, %186, %156 : vector<8x128xi1>, vector<8x128xf32>
    %c5_i32 = arith.constant 5 : i32
    %c7_i32_46 = arith.constant 7 : i32
    %193 = arith.subi %c7_i32_46, %c5_i32 : i32
    %c8_i32_47 = arith.constant 8 : i32
    %194 = arith.muli %193, %c8_i32_47 : i32
    %195 = tpu.assume_multiple %194, 8 : i32
    %196 = arith.index_cast %195 : i32 to index
    %c0_48 = arith.constant 0 : index
    %197 = vector.load %arg6[%196, %c0_48] : memref<64x512xf32, #tpu.memory_space<vmem>>, vector<8x512xf32>
    %cst_49 = arith.constant dense<0.000000e+00> : vector<8x512xf32>
    %198 = tpu.matmul %191, %10, %cst_49 {dimension_numbers = #tpu.dot_dimension_numbers<[1], [0], [0], [1], [0, 0, 1, 1], [], []>} : vector<8x128xf32>, vector<128x512xf32>, vector<8x512xf32> -> vector<8x512xf32>
    %199 = arith.addf %197, %198 : vector<8x512xf32>
    %200 = vector.extract_strided_slice %199 {offsets = [0, 0], sizes = [8, 128], strides = [1, 1]} : vector<8x512xf32> to vector<8x128xf32>
    %201 = arith.negf %200 : vector<8x128xf32>
    %202 = math.exp %201 : vector<8x128xf32>
    %cst_50 = arith.constant 1.000000e+00 : f32
    %203 = vector.broadcast %cst_50 : f32 to vector<8x128xf32>
    %204 = arith.addf %203, %202 : vector<8x128xf32>
    %205 = arith.divf %203, %204 : vector<8x128xf32>
    %206 = vector.extract_strided_slice %199 {offsets = [0, 128], sizes = [8, 128], strides = [1, 1]} : vector<8x512xf32> to vector<8x128xf32>
    %207 = arith.negf %206 : vector<8x128xf32>
    %208 = math.exp %207 : vector<8x128xf32>
    %cst_51 = arith.constant 1.000000e+00 : f32
    %209 = vector.broadcast %cst_51 : f32 to vector<8x128xf32>
    %210 = arith.addf %209, %208 : vector<8x128xf32>
    %211 = arith.divf %209, %210 : vector<8x128xf32>
    %212 = vector.extract_strided_slice %199 {offsets = [0, 256], sizes = [8, 128], strides = [1, 1]} : vector<8x512xf32> to vector<8x128xf32>
    %213 = math.tanh %212 : vector<8x128xf32>
    %214 = vector.extract_strided_slice %199 {offsets = [0, 384], sizes = [8, 128], strides = [1, 1]} : vector<8x512xf32> to vector<8x128xf32>
    %215 = arith.negf %214 : vector<8x128xf32>
    %216 = math.exp %215 : vector<8x128xf32>
    %cst_52 = arith.constant 1.000000e+00 : f32
    %217 = vector.broadcast %cst_52 : f32 to vector<8x128xf32>
    %218 = arith.addf %217, %216 : vector<8x128xf32>
    %219 = arith.divf %217, %218 : vector<8x128xf32>
    %220 = arith.mulf %211, %192 : vector<8x128xf32>
    %221 = arith.mulf %205, %213 : vector<8x128xf32>
    %222 = arith.addf %220, %221 : vector<8x128xf32>
    %223 = math.tanh %222 : vector<8x128xf32>
    %224 = arith.mulf %219, %223 : vector<8x128xf32>
    %225 = vector.broadcast %193 : i32 to vector<8x128xi32>
    %226 = arith.cmpi sgt, %9, %225 : vector<8x128xi32>
    %227 = arith.select %226, %224, %191 : vector<8x128xi1>, vector<8x128xf32>
    %228 = arith.select %226, %222, %192 : vector<8x128xi1>, vector<8x128xf32>
    %c6_i32 = arith.constant 6 : i32
    %c7_i32_53 = arith.constant 7 : i32
    %229 = arith.subi %c7_i32_53, %c6_i32 : i32
    %c8_i32_54 = arith.constant 8 : i32
    %230 = arith.muli %229, %c8_i32_54 : i32
    %231 = tpu.assume_multiple %230, 8 : i32
    %232 = arith.index_cast %231 : i32 to index
    %c0_55 = arith.constant 0 : index
    %233 = vector.load %arg6[%232, %c0_55] : memref<64x512xf32, #tpu.memory_space<vmem>>, vector<8x512xf32>
    %cst_56 = arith.constant dense<0.000000e+00> : vector<8x512xf32>
    %234 = tpu.matmul %227, %10, %cst_56 {dimension_numbers = #tpu.dot_dimension_numbers<[1], [0], [0], [1], [0, 0, 1, 1], [], []>} : vector<8x128xf32>, vector<128x512xf32>, vector<8x512xf32> -> vector<8x512xf32>
    %235 = arith.addf %233, %234 : vector<8x512xf32>
    %236 = vector.extract_strided_slice %235 {offsets = [0, 0], sizes = [8, 128], strides = [1, 1]} : vector<8x512xf32> to vector<8x128xf32>
    %237 = arith.negf %236 : vector<8x128xf32>
    %238 = math.exp %237 : vector<8x128xf32>
    %cst_57 = arith.constant 1.000000e+00 : f32
    %239 = vector.broadcast %cst_57 : f32 to vector<8x128xf32>
    %240 = arith.addf %239, %238 : vector<8x128xf32>
    %241 = arith.divf %239, %240 : vector<8x128xf32>
    %242 = vector.extract_strided_slice %235 {offsets = [0, 128], sizes = [8, 128], strides = [1, 1]} : vector<8x512xf32> to vector<8x128xf32>
    %243 = arith.negf %242 : vector<8x128xf32>
    %244 = math.exp %243 : vector<8x128xf32>
    %cst_58 = arith.constant 1.000000e+00 : f32
    %245 = vector.broadcast %cst_58 : f32 to vector<8x128xf32>
    %246 = arith.addf %245, %244 : vector<8x128xf32>
    %247 = arith.divf %245, %246 : vector<8x128xf32>
    %248 = vector.extract_strided_slice %235 {offsets = [0, 256], sizes = [8, 128], strides = [1, 1]} : vector<8x512xf32> to vector<8x128xf32>
    %249 = math.tanh %248 : vector<8x128xf32>
    %250 = vector.extract_strided_slice %235 {offsets = [0, 384], sizes = [8, 128], strides = [1, 1]} : vector<8x512xf32> to vector<8x128xf32>
    %251 = arith.negf %250 : vector<8x128xf32>
    %252 = math.exp %251 : vector<8x128xf32>
    %cst_59 = arith.constant 1.000000e+00 : f32
    %253 = vector.broadcast %cst_59 : f32 to vector<8x128xf32>
    %254 = arith.addf %253, %252 : vector<8x128xf32>
    %255 = arith.divf %253, %254 : vector<8x128xf32>
    %256 = arith.mulf %247, %228 : vector<8x128xf32>
    %257 = arith.mulf %241, %249 : vector<8x128xf32>
    %258 = arith.addf %256, %257 : vector<8x128xf32>
    %259 = math.tanh %258 : vector<8x128xf32>
    %260 = arith.mulf %255, %259 : vector<8x128xf32>
    %261 = vector.broadcast %229 : i32 to vector<8x128xi32>
    %262 = arith.cmpi sgt, %9, %261 : vector<8x128xi32>
    %263 = arith.select %262, %260, %227 : vector<8x128xi1>, vector<8x128xf32>
    %264 = arith.select %262, %258, %228 : vector<8x128xi1>, vector<8x128xf32>
    %c7_i32_60 = arith.constant 7 : i32
    %c7_i32_61 = arith.constant 7 : i32
    %265 = arith.subi %c7_i32_61, %c7_i32_60 : i32
    %c8_i32_62 = arith.constant 8 : i32
    %266 = arith.muli %265, %c8_i32_62 : i32
    %267 = tpu.assume_multiple %266, 8 : i32
    %268 = arith.index_cast %267 : i32 to index
    %c0_63 = arith.constant 0 : index
    %269 = vector.load %arg6[%268, %c0_63] : memref<64x512xf32, #tpu.memory_space<vmem>>, vector<8x512xf32>
    %cst_64 = arith.constant dense<0.000000e+00> : vector<8x512xf32>
    %270 = tpu.matmul %263, %10, %cst_64 {dimension_numbers = #tpu.dot_dimension_numbers<[1], [0], [0], [1], [0, 0, 1, 1], [], []>} : vector<8x128xf32>, vector<128x512xf32>, vector<8x512xf32> -> vector<8x512xf32>
    %271 = arith.addf %269, %270 : vector<8x512xf32>
    %272 = vector.extract_strided_slice %271 {offsets = [0, 0], sizes = [8, 128], strides = [1, 1]} : vector<8x512xf32> to vector<8x128xf32>
    %273 = arith.negf %272 : vector<8x128xf32>
    %274 = math.exp %273 : vector<8x128xf32>
    %cst_65 = arith.constant 1.000000e+00 : f32
    %275 = vector.broadcast %cst_65 : f32 to vector<8x128xf32>
    %276 = arith.addf %275, %274 : vector<8x128xf32>
    %277 = arith.divf %275, %276 : vector<8x128xf32>
    %278 = vector.extract_strided_slice %271 {offsets = [0, 128], sizes = [8, 128], strides = [1, 1]} : vector<8x512xf32> to vector<8x128xf32>
    %279 = arith.negf %278 : vector<8x128xf32>
    %280 = math.exp %279 : vector<8x128xf32>
    %cst_66 = arith.constant 1.000000e+00 : f32
    %281 = vector.broadcast %cst_66 : f32 to vector<8x128xf32>
    %282 = arith.addf %281, %280 : vector<8x128xf32>
    %283 = arith.divf %281, %282 : vector<8x128xf32>
    %284 = vector.extract_strided_slice %271 {offsets = [0, 256], sizes = [8, 128], strides = [1, 1]} : vector<8x512xf32> to vector<8x128xf32>
    %285 = math.tanh %284 : vector<8x128xf32>
    %286 = vector.extract_strided_slice %271 {offsets = [0, 384], sizes = [8, 128], strides = [1, 1]} : vector<8x512xf32> to vector<8x128xf32>
    %287 = arith.negf %286 : vector<8x128xf32>
    %288 = math.exp %287 : vector<8x128xf32>
    %cst_67 = arith.constant 1.000000e+00 : f32
    %289 = vector.broadcast %cst_67 : f32 to vector<8x128xf32>
    %290 = arith.addf %289, %288 : vector<8x128xf32>
    %291 = arith.divf %289, %290 : vector<8x128xf32>
    %292 = arith.mulf %283, %264 : vector<8x128xf32>
    %293 = arith.mulf %277, %285 : vector<8x128xf32>
    %294 = arith.addf %292, %293 : vector<8x128xf32>
    %295 = math.tanh %294 : vector<8x128xf32>
    %296 = arith.mulf %291, %295 : vector<8x128xf32>
    %297 = vector.broadcast %265 : i32 to vector<8x128xi32>
    %298 = arith.cmpi sgt, %9, %297 : vector<8x128xi32>
    %299 = arith.select %298, %296, %263 : vector<8x128xi1>, vector<8x128xf32>
    %300 = arith.select %298, %294, %264 : vector<8x128xi1>, vector<8x128xf32>
    %c8_i32_68 = arith.constant 8 : i32
    %c0_69 = arith.constant 0 : index
    %c0_70 = arith.constant 0 : index
    %301 = vector.load %arg5[%c0_69, %c0_70] : memref<8x128xf32, #tpu.memory_space<vmem>>, vector<8x128xf32>
    tpu.vector_store %arg5[%c0_69, %c0_70], %299 {strides = array<i32>} : memref<8x128xf32, #tpu.memory_space<vmem>>, vector<8x128xf32>,
    return
  }
}

</mosaic_0001>

<llo_original>
// kernel: text_rnn_forward.1
$region0: #{text_rnn_forward.1}
  #allocation0 [shape = 'u32[]', space=smem, size = 0x4, offset = 0x4, fixed_abs, tag = 'smem constant byte address 0x4 - core index']
  #allocation1 [shape = 'u32[72,128]{1,0:T(1,128)}', space=vmem, size = 0x9000, scoped, tag = 'internal scratch']
  #allocation2 [shape = 'f32[64,512]{1,0:T(8,128)}', space=vmem, size = 0x20000, scoped, tag = 'scratch operand']
  %s0 = inlined_call_operand.vmem [shape: f32[64,40], index: 0, kind: input, shape index: {}]
  %s1 = inlined_call_operand.vmem [shape: s32[8,1], index: 1, kind: input, shape index: {}]
  %s2 = inlined_call_operand.vmem [shape: f32[40,512], index: 2, kind: input, shape index: {}]
  %s3 = inlined_call_operand.hbm [shape: f32[128,512], index: 3, kind: input, shape index: {}]
  %s4 = inlined_call_operand.vmem [shape: f32[1,512], index: 4, kind: input, shape index: {}]
  %s5 = inlined_call_operand.vmem [shape: f32[8,128], index: 5, kind: output, shape index: {}]
  %s6 = sld [smem:[#allocation0]]
  $region34: #{text_rnn_forward.1} parent=0
    _
  %s8 = ssub.s32 1, %s6
  %s9 = scalar_select 0, %s8, %s6
  $region1: #{text_rnn_forward.1} parent=0
    #allocation3 [shape = 'u8[262144]{0}', space=vmem, size = 0x40000, scoped, tag = 'input window, operand 3, single buffered']
    #allocation4 [shape = 's32[1]{0}', space=sflag, size = 0x4, scoped, tag = 'scoped memory for text_rnn_forward.1']
    %10 = vsyncpa [#allocation4], 0
    // Predicated region
    $region2: #{text_rnn_forward.1} parent=1 // pred_check
      _
    $region3: #{text_rnn_forward.1} parent=1 // pred_check_branch
      %12 = sbr.rel (0) target = $region5
    $region4: #{text_rnn_forward.1} parent=1 // pred_region
      _
    $region5: #{text_rnn_forward.1} parent=1 // pred_fallthru
      _
    // Predicated region
    $region6: #{text_rnn_forward.1} parent=1 // pred_check
      _
    $region7: #{text_rnn_forward.1} parent=1 // pred_check_branch
      %14 = sbr.rel (0) target = $region9
    $region8: #{text_rnn_forward.1} parent=1 // pred_region
      _
    $region9: #{text_rnn_forward.1} parent=1 // pred_fallthru
      _
    // Predicated region
    $region10: #{text_rnn_forward.1} parent=1 // pred_check
      _
    $region11: #{text_rnn_forward.1} parent=1 // pred_check_branch
      %16 = sbr.rel (0) target = $region13
    $region12: #{text_rnn_forward.1} parent=1 // pred_region
      _
    $region13: #{text_rnn_forward.1} parent=1 // pred_fallthru
      _
    // Predicated region
    $region14: #{text_rnn_forward.1} parent=1 // pred_check
      _
    $region15: #{text_rnn_forward.1} parent=1 // pred_check_branch
      %18 = sbr.rel (0) target = $region17
    $region16: #{text_rnn_forward.1} parent=1 // pred_region
      %20 = vsyncadd [#allocation4], 0
      %s21 = sshll.u32 %s3, 4
      %s22 = int_to_ptr.hbm [resolvable:$true] %s21
      %s23 = sshll.u32 [#allocation3], 4
      %s24 = int_to_ptr.vmem [resolvable:$true] %s23
      %29 = dma.hbm_to_vmem [thread:$0]  %s22, 8192, %s24, [#allocation4], 512, 512, 32
    $region17: #{text_rnn_forward.1} parent=1 // pred_fallthru
      _
    // Predicated region
    $region18: #{text_rnn_forward.1} parent=1 // pred_check
      _
    $region19: #{text_rnn_forward.1} parent=1 // pred_check_branch
      %31 = sbr.rel (0) target = $region21
    $region20: #{text_rnn_forward.1} parent=1 // pred_region
      _
    $region21: #{text_rnn_forward.1} parent=1 // pred_fallthru
      _
    // Predicated region
    $region22: #{text_rnn_forward.1} parent=1 // pred_check
      _
    $region23: #{text_rnn_forward.1} parent=1 // pred_check_branch
      %33 = sbr.rel (0) target = $region25
    $region24: #{text_rnn_forward.1} parent=1 // pred_region
      %35 = dma.done [#allocation4], 8192
    $region25: #{text_rnn_forward.1} parent=1 // pred_fallthru
      _
    %v36 = vld [vmem:[%s0] sm:$0xff]
    %v37 = vld [vmem:[%s0 + $0x8] sm:$0xff]
    %v38 = vld [vmem:[%s0 + $0x10] sm:$0xff]
    %v39 = vld [vmem:[%s0 + $0x18] sm:$0xff]
    %v40 = vld [vmem:[%s0 + $0x20] sm:$0xff]
    %v41 = vld [vmem:[%s0 + $0x28] sm:$0xff]
    %v42 = vld [vmem:[%s0 + $0x30] sm:$0xff]
    %v43 = vld [vmem:[%s0 + $0x38] sm:$0xff]
    %v44 = vld [vmem:[%s2] sm:$0xff]
    %v45 = vld [vmem:[%s2 + $0x8] sm:$0xff]
    %v46 = vld [vmem:[%s2 + $0x10] sm:$0xff]
    %v47 = vld [vmem:[%s2 + $0x18] sm:$0xff]
    %v48 = vld [vmem:[%s2 + $0x20] sm:$0xff]
    %v49 = vld [vmem:[%s2 + $0x28] sm:$0xff]
    %v50 = vld [vmem:[%s2 + $0x30] sm:$0xff]
    %v51 = vld [vmem:[%s2 + $0x38] sm:$0xff]
    %v52 = vld [vmem:[%s2 + $0x40] sm:$0xff]
    %v53 = vld [vmem:[%s2 + $0x48] sm:$0xff]
    %v54 = vld [vmem:[%s2 + $0x50] sm:$0xff]
    %v55 = vld [vmem:[%s2 + $0x58] sm:$0xff]
    %v56 = vld [vmem:[%s2 + $0x60] sm:$0xff]
    %v57 = vld [vmem:[%s2 + $0x68] sm:$0xff]
    %v58 = vld [vmem:[%s2 + $0x70] sm:$0xff]
    %v59 = vld [vmem:[%s2 + $0x78] sm:$0xff]
    %v60 = vld [vmem:[%s2 + $0x80] sm:$0xff]
    %v61 = vld [vmem:[%s2 + $0x88] sm:$0xff]
    %v62 = vld [vmem:[%s2 + $0x90] sm:$0xff]
    %v63 = vld [vmem:[%s2 + $0x98] sm:$0xff]
    %v64 = vld [vmem:[%s4] sm:$0xf]
    %v66 = vperm.slane %v64, 0
    %v67 = vperm.slane %v64, 1
    %v68 = vperm.slane %v64, 2
    %v69 = vperm.slane %v64, 3
    %vm74 = vcmask 326656
    %v76 = vsel %vm74, %v36, 0
    %v79 = vsel %vm74, %v37, 0
    %v82 = vsel %vm74, %v38, 0
    %v85 = vsel %vm74, %v39, 0
    %v88 = vsel %vm74, %v40, 0
    %v91 = vsel %vm74, %v41, 0
    %v94 = vsel %vm74, %v42, 0
    %v97 = vsel %vm74, %v43, 0
    %99 = vmatpush.msra.mxu0 0.0
    %100 = vmatpush.msra.mxu0 0.0
    %101 = vmatpush.msra.mxu0 0.0
    %102 = vmatpush.msra.mxu0 0.0
    %103 = vmatpush.msra.mxu0 0.0
    %104 = vmatpush.msra.mxu0 0.0
    %105 = vmatpush.msra.mxu0 0.0
    %106 = vmatpush.msra.mxu0 0.0
    %107 = vmatpush.msra.mxu0 0.0
    %108 = vmatpush.msra.mxu0 0.0
    %109 = vmatpush.msra.mxu0 0.0
    %110 = vmatpush.msra.mxu0 %v60
    %111 = vmatpush.msra.mxu0 %v56
    %112 = vmatpush.msra.mxu0 %v52
    %113 = vmatpush.msra.mxu0 %v48
    %114 = vmatpush.msra.mxu0 %v44
    %115 = vmatmul.f32.gmra.mxu0 %v76
    %v116 = vpop.f32.mrf.mxu0
    %v117 = vadd.f32 %v66, %v116
    %118 = vmatmul.f32.gmra.mxu0 %v79
    %v119 = vpop.f32.mrf.mxu0
    %v120 = vadd.f32 %v66, %v119
    %121 = vmatmul.f32.gmra.mxu0 %v82
    %v122 = vpop.f32.mrf.mxu0
    %v123 = vadd.f32 %v66, %v122
    %124 = vmatmul.f32.gmra.mxu0 %v85
    %v125 = vpop.f32.mrf.mxu0
    %v126 = vadd.f32 %v66, %v125
    %127 = vmatmul.f32.gmra.mxu0 %v88
    %v128 = vpop.f32.mrf.mxu0
    %v129 = vadd.f32 %v66, %v128
    %130 = vmatmul.f32.gmra.mxu0 %v91
    %v131 = vpop.f32.mrf.mxu0
    %v132 = vadd.f32 %v66, %v131
    %133 = vmatmul.f32.gmra.mxu0 %v94
    %v134 = vpop.f32.mrf.mxu0
    %v135 = vadd.f32 %v66, %v134
    %136 = vmatmul.f32.gmra.mxu0 %v97
    %v137 = vpop.f32.mrf.mxu0
    %v138 = vadd.f32 %v66, %v137
    %139 = vdwg.mxu0
    %140 = vmatpush.msra.mxu0 0.0
    %141 = vmatpush.msra.mxu0 0.0
    %142 = vmatpush.msra.mxu0 0.0
    %143 = vmatpush.msra.mxu0 0.0
    %144 = vmatpush.msra.mxu0 0.0
    %145 = vmatpush.msra.mxu0 0.0
    %146 = vmatpush.msra.mxu0 0.0
    %147 = vmatpush.msra.mxu0 0.0
    %148 = vmatpush.msra.mxu0 0.0
    %149 = vmatpush.msra.mxu0 0.0
    %150 = vmatpush.msra.mxu0 0.0
    %151 = vmatpush.msra.mxu0 %v61
    %152 = vmatpush.msra.mxu0 %v57
    %153 = vmatpush.msra.mxu0 %v53
    %154 = vmatpush.msra.mxu0 %v49
    %155 = vmatpush.msra.mxu0 %v45
    %156 = vmatmul.f32.gmra.mxu0 %v76
    %v157 = vpop.f32.mrf.mxu0
    %v158 = vadd.f32 %v67, %v157
    %159 = vmatmul.f32.gmra.mxu0 %v79
    %v160 = vpop.f32.mrf.mxu0
    %v161 = vadd.f32 %v67, %v160
    %162 = vmatmul.f32.gmra.mxu0 %v82
    %v163 = vpop.f32.mrf.mxu0
    %v164 = vadd.f32 %v67, %v163
    %165 = vmatmul.f32.gmra.mxu0 %v85
    %v166 = vpop.f32.mrf.mxu0
    %v167 = vadd.f32 %v67, %v166
    %168 = vmatmul.f32.gmra.mxu0 %v88
    %v169 = vpop.f32.mrf.mxu0
    %v170 = vadd.f32 %v67, %v169
    %171 = vmatmul.f32.gmra.mxu0 %v91
    %v172 = vpop.f32.mrf.mxu0
    %v173 = vadd.f32 %v67, %v172
    %174 = vmatmul.f32.gmra.mxu0 %v94
    %v175 = vpop.f32.mrf.mxu0
    %v176 = vadd.f32 %v67, %v175
    %177 = vmatmul.f32.gmra.mxu0 %v97
    %v178 = vpop.f32.mrf.mxu0
    %v179 = vadd.f32 %v67, %v178
    %180 = vdwg.mxu0
    %181 = vmatpush.msra.mxu0 0.0
    %182 = vmatpush.msra.mxu0 0.0
    %183 = vmatpush.msra.mxu0 0.0
    %184 = vmatpush.msra.mxu0 0.0
    %185 = vmatpush.msra.mxu0 0.0
    %186 = vmatpush.msra.mxu0 0.0
    %187 = vmatpush.msra.mxu0 0.0
    %188 = vmatpush.msra.mxu0 0.0
    %189 = vmatpush.msra.mxu0 0.0
    %190 = vmatpush.msra.mxu0 0.0
    %191 = vmatpush.msra.mxu0 0.0
    %192 = vmatpush.msra.mxu0 %v62
    %193 = vmatpush.msra.mxu0 %v58
    %194 = vmatpush.msra.mxu0 %v54
    %195 = vmatpush.msra.mxu0 %v50
    %196 = vmatpush.msra.mxu0 %v46
    %197 = vmatmul.f32.gmra.mxu0 %v76
    %v198 = vpop.f32.mrf.mxu0
    %v199 = vadd.f32 %v68, %v198
    %200 = vmatmul.f32.gmra.mxu0 %v79
    %v201 = vpop.f32.mrf.mxu0
    %v202 = vadd.f32 %v68, %v201
    %203 = vmatmul.f32.gmra.mxu0 %v82
    %v204 = vpop.f32.mrf.mxu0
    %v205 = vadd.f32 %v68, %v204
    %206 = vmatmul.f32.gmra.mxu0 %v85
    %v207 = vpop.f32.mrf.mxu0
    %v208 = vadd.f32 %v68, %v207
    %209 = vmatmul.f32.gmra.mxu0 %v88
    %v210 = vpop.f32.mrf.mxu0
    %v211 = vadd.f32 %v68, %v210
    %212 = vmatmul.f32.gmra.mxu0 %v91
    %v213 = vpop.f32.mrf.mxu0
    %v214 = vadd.f32 %v68, %v213
    %215 = vmatmul.f32.gmra.mxu0 %v94
    %v216 = vpop.f32.mrf.mxu0
    %v217 = vadd.f32 %v68, %v216
    %218 = vmatmul.f32.gmra.mxu0 %v97
    %v219 = vpop.f32.mrf.mxu0
    %v220 = vadd.f32 %v68, %v219
    %221 = vdwg.mxu0
    %222 = vmatpush.msra.mxu0 0.0
    %223 = vmatpush.msra.mxu0 0.0
    %224 = vmatpush.msra.mxu0 0.0
    %225 = vmatpush.msra.mxu0 0.0
    %226 = vmatpush.msra.mxu0 0.0
    %227 = vmatpush.msra.mxu0 0.0
    %228 = vmatpush.msra.mxu0 0.0
    %229 = vmatpush.msra.mxu0 0.0
    %230 = vmatpush.msra.mxu0 0.0
    %231 = vmatpush.msra.mxu0 0.0
    %232 = vmatpush.msra.mxu0 0.0
    %233 = vmatpush.msra.mxu0 %v63
    %234 = vmatpush.msra.mxu0 %v59
    %235 = vmatpush.msra.mxu0 %v55
    %236 = vmatpush.msra.mxu0 %v51
    %237 = vmatpush.msra.mxu0 %v47
    %238 = vmatmul.f32.gmra.mxu0 %v76
    %v239 = vpop.f32.mrf.mxu0
    %v240 = vadd.f32 %v69, %v239
    %241 = vmatmul.f32.gmra.mxu0 %v79
    %v242 = vpop.f32.mrf.mxu0
    %v243 = vadd.f32 %v69, %v242
    %244 = vmatmul.f32.gmra.mxu0 %v82
    %v245 = vpop.f32.mrf.mxu0
    %v246 = vadd.f32 %v69, %v245
    %247 = vmatmul.f32.gmra.mxu0 %v85
    %v248 = vpop.f32.mrf.mxu0
    %v249 = vadd.f32 %v69, %v248
    %250 = vmatmul.f32.gmra.mxu0 %v88
    %v251 = vpop.f32.mrf.mxu0
    %v252 = vadd.f32 %v69, %v251
    %253 = vmatmul.f32.gmra.mxu0 %v91
    %v254 = vpop.f32.mrf.mxu0
    %v255 = vadd.f32 %v69, %v254
    %256 = vmatmul.f32.gmra.mxu0 %v94
    %v257 = vpop.f32.mrf.mxu0
    %v258 = vadd.f32 %v69, %v257
    %259 = vmatmul.f32.gmra.mxu0 %v97
    %v260 = vpop.f32.mrf.mxu0
    %v261 = vadd.f32 %v69, %v260
    %262 = vdwg.mxu0
    %263 = vst [vmem:[#allocation2] sm:$0xff] %v117
    %264 = vst [vmem:[#allocation2 + $0x8] sm:$0xff] %v158
    %265 = vst [vmem:[#allocation2 + $0x10] sm:$0xff] %v199
    %266 = vst [vmem:[#allocation2 + $0x18] sm:$0xff] %v240
    %267 = vst [vmem:[#allocation2 + $0x20] sm:$0xff] %v120
    %268 = vst [vmem:[#allocation2 + $0x28] sm:$0xff] %v161
    %269 = vst [vmem:[#allocation2 + $0x30] sm:$0xff] %v202
    %270 = vst [vmem:[#allocation2 + $0x38] sm:$0xff] %v243
    %271 = vst [vmem:[#allocation2 + $0x40] sm:$0xff] %v123
    %272 = vst [vmem:[#allocation2 + $0x48] sm:$0xff] %v164
    %273 = vst [vmem:[#allocation2 + $0x50] sm:$0xff] %v205
    %274 = vst [vmem:[#allocation2 + $0x58] sm:$0xff] %v246
    %275 = vst [vmem:[#allocation2 + $0x60] sm:$0xff] %v126
    %276 = vst [vmem:[#allocation2 + $0x68] sm:$0xff] %v167
    %277 = vst [vmem:[#allocation2 + $0x70] sm:$0xff] %v208
    %278 = vst [vmem:[#allocation2 + $0x78] sm:$0xff] %v249
    %279 = vst [vmem:[#allocation2 + $0x80] sm:$0xff] %v129
    %280 = vst [vmem:[#allocation2 + $0x88] sm:$0xff] %v170
    %281 = vst [vmem:[#allocation2 + $0x90] sm:$0xff] %v211
    %282 = vst [vmem:[#allocation2 + $0x98] sm:$0xff] %v252
    %283 = vst [vmem:[#allocation2 + $0xa0] sm:$0xff] %v132
    %284 = vst [vmem:[#allocation2 + $0xa8] sm:$0xff] %v173
    %285 = vst [vmem:[#allocation2 + $0xb0] sm:$0xff] %v214
    %286 = vst [vmem:[#allocation2 + $0xb8] sm:$0xff] %v255
    %287 = vst [vmem:[#allocation2 + $0xc0] sm:$0xff] %v135
    %288 = vst [vmem:[#allocation2 + $0xc8] sm:$0xff] %v176
    %289 = vst [vmem:[#allocation2 + $0xd0] sm:$0xff] %v217
    %290 = vst [vmem:[#allocation2 + $0xd8] sm:$0xff] %v258
    %291 = vst [vmem:[#allocation2 + $0xe0] sm:$0xff] %v138
    %292 = vst [vmem:[#allocation2 + $0xe8] sm:$0xff] %v179
    %293 = vst [vmem:[#allocation2 + $0xf0] sm:$0xff] %v220
    %294 = vst [vmem:[#allocation2 + $0xf8] sm:$0xff] %v261
    %v295 = vld [vmem:[%s1] sm:$0xff]
    %296 = vset.pattern.permute.xlu0 0
    %297 = vperm.xlu0 %296, %v295
    %v298 = vpop.permute.xlu0 %297
    %v299 = vld [vmem:[#allocation3] sm:$0xff]
    %v300 = vld [vmem:[#allocation3 + $0x8] sm:$0xff]
    %v301 = vld [vmem:[#allocation3 + $0x10] sm:$0xff]
    %v302 = vld [vmem:[#allocation3 + $0x18] sm:$0xff]
    %v303 = vld [vmem:[#allocation3 + $0x20] sm:$0xff]
    %v304 = vld [vmem:[#allocation3 + $0x28] sm:$0xff]
    %v305 = vld [vmem:[#allocation3 + $0x30] sm:$0xff]
    %v306 = vld [vmem:[#allocation3 + $0x38] sm:$0xff]
    %v307 = vld [vmem:[#allocation3 + $0x40] sm:$0xff]
    %v308 = vld [vmem:[#allocation3 + $0x48] sm:$0xff]
    %v309 = vld [vmem:[#allocation3 + $0x50] sm:$0xff]
    %v310 = vld [vmem:[#allocation3 + $0x58] sm:$0xff]
    %v311 = vld [vmem:[#allocation3 + $0x60] sm:$0xff]
    %v312 = vld [vmem:[#allocation3 + $0x68] sm:$0xff]
    %v313 = vld [vmem:[#allocation3 + $0x70] sm:$0xff]
    %v314 = vld [vmem:[#allocation3 + $0x78] sm:$0xff]
    %v315 = vld [vmem:[#allocation3 + $0x80] sm:$0xff]
    %v316 = vld [vmem:[#allocation3 + $0x88] sm:$0xff]
    %v317 = vld [vmem:[#allocation3 + $0x90] sm:$0xff]
    %v318 = vld [vmem:[#allocation3 + $0x98] sm:$0xff]
    %v319 = vld [vmem:[#allocation3 + $0xa0] sm:$0xff]
    %v320 = vld [vmem:[#allocation3 + $0xa8] sm:$0xff]
    %v321 = vld [vmem:[#allocation3 + $0xb0] sm:$0xff]
    %v322 = vld [vmem:[#allocation3 + $0xb8] sm:$0xff]
    %v323 = vld [vmem:[#allocation3 + $0xc0] sm:$0xff]
    %v324 = vld [vmem:[#allocation3 + $0xc8] sm:$0xff]
    %v325 = vld [vmem:[#allocation3 + $0xd0] sm:$0xff]
    %v326 = vld [vmem:[#allocation3 + $0xd8] sm:$0xff]
    %v327 = vld [vmem:[#allocation3 + $0xe0] sm:$0xff]
    %v328 = vld [vmem:[#allocation3 + $0xe8] sm:$0xff]
    %v329 = vld [vmem:[#allocation3 + $0xf0] sm:$0xff]
    %v330 = vld [vmem:[#allocation3 + $0xf8] sm:$0xff]
    %v331 = vld [vmem:[#allocation3 + $0x100] sm:$0xff]
    %v332 = vld [vmem:[#allocation3 + $0x108] sm:$0xff]
    %v333 = vld [vmem:[#allocation3 + $0x110] sm:$0xff]
    %v334 = vld [vmem:[#allocation3 + $0x118] sm:$0xff]
    %v335 = vld [vmem:[#allocation3 + $0x120] sm:$0xff]
    %v336 = vld [vmem:[#allocation3 + $0x128] sm:$0xff]
    %v337 = vld [vmem:[#allocation3 + $0x130] sm:$0xff]
    %v338 = vld [vmem:[#allocation3 + $0x138] sm:$0xff]
    %v339 = vld [vmem:[#allocation3 + $0x140] sm:$0xff]
    %v340 = vld [vmem:[#allocation3 + $0x148] sm:$0xff]
    %v341 = vld [vmem:[#allocation3 + $0x150] sm:$0xff]
    %v342 = vld [vmem:[#allocation3 + $0x158] sm:$0xff]
    %v343 = vld [vmem:[#allocation3 + $0x160] sm:$0xff]
    %v344 = vld [vmem:[#allocation3 + $0x168] sm:$0xff]
    %v345 = vld [vmem:[#allocation3 + $0x170] sm:$0xff]
    %v346 = vld [vmem:[#allocation3 + $0x178] sm:$0xff]
    %v347 = vld [vmem:[#allocation3 + $0x180] sm:$0xff]
    %v348 = vld [vmem:[#allocation3 + $0x188] sm:$0xff]
    %v349 = vld [vmem:[#allocation3 + $0x190] sm:$0xff]
    %v350 = vld [vmem:[#allocation3 + $0x198] sm:$0xff]
    %v351 = vld [vmem:[#allocation3 + $0x1a0] sm:$0xff]
    %v352 = vld [vmem:[#allocation3 + $0x1a8] sm:$0xff]
    %v353 = vld [vmem:[#allocation3 + $0x1b0] sm:$0xff]
    %v354 = vld [vmem:[#allocation3 + $0x1b8] sm:$0xff]
    %v355 = vld [vmem:[#allocation3 + $0x1c0] sm:$0xff]
    %v356 = vld [vmem:[#allocation3 + $0x1c8] sm:$0xff]
    %v357 = vld [vmem:[#allocation3 + $0x1d0] sm:$0xff]
    %v358 = vld [vmem:[#allocation3 + $0x1d8] sm:$0xff]
    %v359 = vld [vmem:[#allocation3 + $0x1e0] sm:$0xff]
    %v360 = vld [vmem:[#allocation3 + $0x1e8] sm:$0xff]
    %v361 = vld [vmem:[#allocation3 + $0x1f0] sm:$0xff]
    %v362 = vld [vmem:[#allocation3 + $0x1f8] sm:$0xff]
    %s363 = smul.u32 7, 4
    %s364 = smul.addr %s363, 8
    %s365 = scalar_lea.vmem [#allocation2], %s364
    %v366 = vld [vmem:[%s365] sm:$0xff]
    %v367 = vld [vmem:[%s365 + $0x8] sm:$0xff]
    %v368 = vld [vmem:[%s365 + $0x10] sm:$0xff]
    %v369 = vld [vmem:[%s365 + $0x18] sm:$0xff]
    %370 = vmatpush.msra.mxu0 %v359
    %371 = vmatpush.msra.mxu0 %v355
    %372 = vmatpush.msra.mxu0 %v351
    %373 = vmatpush.msra.mxu0 %v347
    %374 = vmatpush.msra.mxu0 %v343
    %375 = vmatpush.msra.mxu0 %v339
    %376 = vmatpush.msra.mxu0 %v335
    %377 = vmatpush.msra.mxu0 %v331
    %378 = vmatpush.msra.mxu0 %v327
    %379 = vmatpush.msra.mxu0 %v323
    %380 = vmatpush.msra.mxu0 %v319
    %381 = vmatpush.msra.mxu0 %v315
    %382 = vmatpush.msra.mxu0 %v311
    %383 = vmatpush.msra.mxu0 %v307
    %384 = vmatpush.msra.mxu0 %v303
    %385 = vmatpush.msra.mxu0 %v299
    %386 = vmatmul.f32.gmra.mxu0 0.0
    %v387 = vpop.f32.mrf.mxu0
    %v388 = vadd.f32 0.0, %v387
    %389 = vdwg.mxu0
    %390 = vmatpush.msra.mxu0 %v360
    %391 = vmatpush.msra.mxu0 %v356
    %392 = vmatpush.msra.mxu0 %v352
    %393 = vmatpush.msra.mxu0 %v348
    %394 = vmatpush.msra.mxu0 %v344
    %395 = vmatpush.msra.mxu0 %v340
    %396 = vmatpush.msra.mxu0 %v336
    %397 = vmatpush.msra.mxu0 %v332
    %398 = vmatpush.msra.mxu0 %v328
    %399 = vmatpush.msra.mxu0 %v324
    %400 = vmatpush.msra.mxu0 %v320
    %401 = vmatpush.msra.mxu0 %v316
    %402 = vmatpush.msra.mxu0 %v312
    %403 = vmatpush.msra.mxu0 %v308
    %404 = vmatpush.msra.mxu0 %v304
    %405 = vmatpush.msra.mxu0 %v300
    %406 = vmatmul.f32.gmra.mxu0 0.0
    %v407 = vpop.f32.mrf.mxu0
    %v408 = vadd.f32 0.0, %v407
    %409 = vdwg.mxu0
    %410 = vmatpush.msra.mxu0 %v361
    %411 = vmatpush.msra.mxu0 %v357
    %412 = vmatpush.msra.mxu0 %v353
    %413 = vmatpush.msra.mxu0 %v349
    %414 = vmatpush.msra.mxu0 %v345
    %415 = vmatpush.msra.mxu0 %v341
    %416 = vmatpush.msra.mxu0 %v337
    %417 = vmatpush.msra.mxu0 %v333
    %418 = vmatpush.msra.mxu0 %v329
    %419 = vmatpush.msra.mxu0 %v325
    %420 = vmatpush.msra.mxu0 %v321
    %421 = vmatpush.msra.mxu0 %v317
    %422 = vmatpush.msra.mxu0 %v313
    %423 = vmatpush.msra.mxu0 %v309
    %424 = vmatpush.msra.mxu0 %v305
    %425 = vmatpush.msra.mxu0 %v301
    %426 = vmatmul.f32.gmra.mxu0 0.0
    %v427 = vpop.f32.mrf.mxu0
    %v428 = vadd.f32 0.0, %v427
    %429 = vdwg.mxu0
    %430 = vmatpush.msra.mxu0 %v362
    %431 = vmatpush.msra.mxu0 %v358
    %432 = vmatpush.msra.mxu0 %v354
    %433 = vmatpush.msra.mxu0 %v350
    %434 = vmatpush.msra.mxu0 %v346
    %435 = vmatpush.msra.mxu0 %v342
    %436 = vmatpush.msra.mxu0 %v338
    %437 = vmatpush.msra.mxu0 %v334
    %438 = vmatpush.msra.mxu0 %v330
    %439 = vmatpush.msra.mxu0 %v326
    %440 = vmatpush.msra.mxu0 %v322
    %441 = vmatpush.msra.mxu0 %v318
    %442 = vmatpush.msra.mxu0 %v314
    %443 = vmatpush.msra.mxu0 %v310
    %444 = vmatpush.msra.mxu0 %v306
    %445 = vmatpush.msra.mxu0 %v302
    %446 = vmatmul.f32.gmra.mxu0 0.0
    %v447 = vpop.f32.mrf.mxu0
    %v448 = vadd.f32 0.0, %v447
    %449 = vdwg.mxu0
    %v450 = vadd.f32 %v366, %v388
    %v451 = vadd.f32 %v367, %v408
    %v452 = vadd.f32 %v368, %v428
    %v453 = vadd.f32 %v369, %v448
    %v454 = vxor.u32 %v450, 2147483648
    %v455 = vmul.f32 %v454, 1.442695
    %v456 = vpow.pop %v455
    %v457 = vadd.f32 %v456, 1.0
    %v458 = vrcp.pop %v457
    %v459 = vmul.f32 %v457, %v458
    %v460 = vsub.f32 1.0, %v459
    %v461 = vmul.f32 %v458, %v460
    %v462 = vadd.f32 %v458, %v461
    %vm463 = vweird.f32 %v457
    %vm464 = vweird.f32 %v458
    %vm465 = vmor %vm463, %vm464
    %v466 = vsel %vm465, %v458, %v462
    %v467 = vand.u32 2147483647, %v457
    %vm468 = vcmp.eq.f32.partialorder %v467, 8.507059e+37
    %v469 = vand.u32 %v457, 2147483648
    %v470 = vor.u32 1.1754944e-38, %v469
    %v471 = vsel %vm468, %v470, %v466
    %v472 = vmul.f32 1.0, %v471
    %v473 = vxor.u32 %v451, 2147483648
    %v474 = vmul.f32 %v473, 1.442695
    %v475 = vpow.pop %v474
    %v476 = vadd.f32 %v475, 1.0
    %v477 = vrcp.pop %v476
    %v478 = vmul.f32 %v476, %v477
    %v479 = vsub.f32 1.0, %v478
    %v480 = vmul.f32 %v477, %v479
    %v481 = vadd.f32 %v477, %v480
    %vm482 = vweird.f32 %v476
    %vm483 = vweird.f32 %v477
    %vm484 = vmor %vm482, %vm483
    %v485 = vsel %vm484, %v477, %v481
    %v486 = vand.u32 2147483647, %v476
    %vm487 = vcmp.eq.f32.partialorder %v486, 8.507059e+37
    %v488 = vand.u32 %v476, 2147483648
    %v489 = vor.u32 1.1754944e-38, %v488
    %v490 = vsel %vm487, %v489, %v485
    %v491 = vmul.f32 1.0, %v490
    %v492 = vtanh.pop %v452
    %v493 = vxor.u32 %v453, 2147483648
    %v494 = vmul.f32 %v493, 1.442695
    %v495 = vpow.pop %v494
    %v496 = vadd.f32 %v495, 1.0
    %v497 = vrcp.pop %v496
    %v498 = vmul.f32 %v496, %v497
    %v499 = vsub.f32 1.0, %v498
    %v500 = vmul.f32 %v497, %v499
    %v501 = vadd.f32 %v497, %v500
    %vm502 = vweird.f32 %v496
    %vm503 = vweird.f32 %v497
    %vm504 = vmor %vm502, %vm503
    %v505 = vsel %vm504, %v497, %v501
    %v506 = vand.u32 2147483647, %v496
    %vm507 = vcmp.eq.f32.partialorder %v506, 8.507059e+37
    %v508 = vand.u32 %v496, 2147483648
    %v509 = vor.u32 1.1754944e-38, %v508
    %v510 = vsel %vm507, %v509, %v505
    %v511 = vmul.f32 1.0, %v510
    %v512 = vmul.f32 %v491, 0.0
    %v513 = vmul.f32 %v472, %v492
    %v514 = vadd.f32 %v512, %v513
    %v515 = vtanh.pop %v514
    %v516 = vmul.f32 %v511, %v515
    %vm517 = vcmp.gt.s32.totalorder %v298, 7
    %v518 = vsel %vm517, %v516, 0.0
    %v519 = vsel %vm517, %v514, 0.0
    %s520 = smul.u32 6, 4
    %s521 = smul.addr %s520, 8
    %s522 = scalar_lea.vmem [#allocation2], %s521
    %v523 = vld [vmem:[%s522] sm:$0xff]
    %v524 = vld [vmem:[%s522 + $0x8] sm:$0xff]
    %v525 = vld [vmem:[%s522 + $0x10] sm:$0xff]
    %v526 = vld [vmem:[%s522 + $0x18] sm:$0xff]
    %527 = vmatpush.msra.mxu0 %v359
    %528 = vmatpush.msra.mxu0 %v355
    %529 = vmatpush.msra.mxu0 %v351
    %530 = vmatpush.msra.mxu0 %v347
    %531 = vmatpush.msra.mxu0 %v343
    %532 = vmatpush.msra.mxu0 %v339
    %533 = vmatpush.msra.mxu0 %v335
    %534 = vmatpush.msra.mxu0 %v331
    %535 = vmatpush.msra.mxu0 %v327
    %536 = vmatpush.msra.mxu0 %v323
    %537 = vmatpush.msra.mxu0 %v319
    %538 = vmatpush.msra.mxu0 %v315
    %539 = vmatpush.msra.mxu0 %v311
    %540 = vmatpush.msra.mxu0 %v307
    %541 = vmatpush.msra.mxu0 %v303
    %542 = vmatpush.msra.mxu0 %v299
    %543 = vmatmul.f32.gmra.mxu0 %v518
    %v544 = vpop.f32.mrf.mxu0
    %v545 = vadd.f32 0.0, %v544
    %546 = vdwg.mxu0
    %547 = vmatpush.msra.mxu0 %v360
    %548 = vmatpush.msra.mxu0 %v356
    %549 = vmatpush.msra.mxu0 %v352
    %550 = vmatpush.msra.mxu0 %v348
    %551 = vmatpush.msra.mxu0 %v344
    %552 = vmatpush.msra.mxu0 %v340
    %553 = vmatpush.msra.mxu0 %v336
    %554 = vmatpush.msra.mxu0 %v332
    %555 = vmatpush.msra.mxu0 %v328
    %556 = vmatpush.msra.mxu0 %v324
    %557 = vmatpush.msra.mxu0 %v320
    %558 = vmatpush.msra.mxu0 %v316
    %559 = vmatpush.msra.mxu0 %v312
    %560 = vmatpush.msra.mxu0 %v308
    %561 = vmatpush.msra.mxu0 %v304
    %562 = vmatpush.msra.mxu0 %v300
    %563 = vmatmul.f32.gmra.mxu0 %v518
    %v564 = vpop.f32.mrf.mxu0
    %v565 = vadd.f32 0.0, %v564
    %566 = vdwg.mxu0
    %567 = vmatpush.msra.mxu0 %v361
    %568 = vmatpush.msra.mxu0 %v357
    %569 = vmatpush.msra.mxu0 %v353
    %570 = vmatpush.msra.mxu0 %v349
    %571 = vmatpush.msra.mxu0 %v345
    %572 = vmatpush.msra.mxu0 %v341
    %573 = vmatpush.msra.mxu0 %v337
    %574 = vmatpush.msra.mxu0 %v333
    %575 = vmatpush.msra.mxu0 %v329
    %576 = vmatpush.msra.mxu0 %v325
    %577 = vmatpush.msra.mxu0 %v321
    %578 = vmatpush.msra.mxu0 %v317
    %579 = vmatpush.msra.mxu0 %v313
    %580 = vmatpush.msra.mxu0 %v309
    %581 = vmatpush.msra.mxu0 %v305
    %582 = vmatpush.msra.mxu0 %v301
    %583 = vmatmul.f32.gmra.mxu0 %v518
    %v584 = vpop.f32.mrf.mxu0
    %v585 = vadd.f32 0.0, %v584
    %586 = vdwg.mxu0
    %587 = vmatpush.msra.mxu0 %v362
    %588 = vmatpush.msra.mxu0 %v358
    %589 = vmatpush.msra.mxu0 %v354
    %590 = vmatpush.msra.mxu0 %v350
    %591 = vmatpush.msra.mxu0 %v346
    %592 = vmatpush.msra.mxu0 %v342
    %593 = vmatpush.msra.mxu0 %v338
    %594 = vmatpush.msra.mxu0 %v334
    %595 = vmatpush.msra.mxu0 %v330
    %596 = vmatpush.msra.mxu0 %v326
    %597 = vmatpush.msra.mxu0 %v322
    %598 = vmatpush.msra.mxu0 %v318
    %599 = vmatpush.msra.mxu0 %v314
    %600 = vmatpush.msra.mxu0 %v310
    %601 = vmatpush.msra.mxu0 %v306
    %602 = vmatpush.msra.mxu0 %v302
    %603 = vmatmul.f32.gmra.mxu0 %v518
    %v604 = vpop.f32.mrf.mxu0
    %v605 = vadd.f32 0.0, %v604
    %606 = vdwg.mxu0
    %v607 = vadd.f32 %v523, %v545
    %v608 = vadd.f32 %v524, %v565
    %v609 = vadd.f32 %v525, %v585
    %v610 = vadd.f32 %v526, %v605
    %v611 = vxor.u32 %v607, 2147483648
    %v612 = vmul.f32 %v611, 1.442695
    %v613 = vpow.pop %v612
    %v614 = vadd.f32 %v613, 1.0
    %v615 = vrcp.pop %v614
    %v616 = vmul.f32 %v614, %v615
    %v617 = vsub.f32 1.0, %v616
    %v618 = vmul.f32 %v615, %v617
    %v619 = vadd.f32 %v615, %v618
    %vm620 = vweird.f32 %v614
    %vm621 = vweird.f32 %v615
    %vm622 = vmor %vm620, %vm621
    %v623 = vsel %vm622, %v615, %v619
    %v624 = vand.u32 2147483647, %v614
    %vm625 = vcmp.eq.f32.partialorder %v624, 8.507059e+37
    %v626 = vand.u32 %v614, 2147483648
    %v627 = vor.u32 1.1754944e-38, %v626
    %v628 = vsel %vm625, %v627, %v623
    %v629 = vmul.f32 1.0, %v628
    %v630 = vxor.u32 %v608, 2147483648
    %v631 = vmul.f32 %v630, 1.442695
    %v632 = vpow.pop %v631
    %v633 = vadd.f32 %v632, 1.0
    %v634 = vrcp.pop %v633
    %v635 = vmul.f32 %v633, %v634
    %v636 = vsub.f32 1.0, %v635
    %v637 = vmul.f32 %v634, %v636
    %v638 = vadd.f32 %v634, %v637
    %vm639 = vweird.f32 %v633
    %vm640 = vweird.f32 %v634
    %vm641 = vmor %vm639, %vm640
    %v642 = vsel %vm641, %v634, %v638
    %v643 = vand.u32 2147483647, %v633
    %vm644 = vcmp.eq.f32.partialorder %v643, 8.507059e+37
    %v645 = vand.u32 %v633, 2147483648
    %v646 = vor.u32 1.1754944e-38, %v645
    %v647 = vsel %vm644, %v646, %v642
    %v648 = vmul.f32 1.0, %v647
    %v649 = vtanh.pop %v609
    %v650 = vxor.u32 %v610, 2147483648
    %v651 = vmul.f32 %v650, 1.442695
    %v652 = vpow.pop %v651
    %v653 = vadd.f32 %v652, 1.0
    %v654 = vrcp.pop %v653
    %v655 = vmul.f32 %v653, %v654
    %v656 = vsub.f32 1.0, %v655
    %v657 = vmul.f32 %v654, %v656
    %v658 = vadd.f32 %v654, %v657
    %vm659 = vweird.f32 %v653
    %vm660 = vweird.f32 %v654
    %vm661 = vmor %vm659, %vm660
    %v662 = vsel %vm661, %v654, %v658
    %v663 = vand.u32 2147483647, %v653
    %vm664 = vcmp.eq.f32.partialorder %v663, 8.507059e+37
    %v665 = vand.u32 %v653, 2147483648
    %v666 = vor.u32 1.1754944e-38, %v665
    %v667 = vsel %vm664, %v666, %v662
    %v668 = vmul.f32 1.0, %v667
    %v669 = vmul.f32 %v648, %v519
    %v670 = vmul.f32 %v629, %v649
    %v671 = vadd.f32 %v669, %v670
    %v672 = vtanh.pop %v671
    %v673 = vmul.f32 %v668, %v672
    %vm674 = vcmp.gt.s32.totalorder %v298, 6
    %v675 = vsel %vm674, %v673, %v518
    %v676 = vsel %vm674, %v671, %v519
    %s677 = smul.u32 5, 4
    %s678 = smul.addr %s677, 8
    %s679 = scalar_lea.vmem [#allocation2], %s678
    %v680 = vld [vmem:[%s679] sm:$0xff]
    %v681 = vld [vmem:[%s679 + $0x8] sm:$0xff]
    %v682 = vld [vmem:[%s679 + $0x10] sm:$0xff]
    %v683 = vld [vmem:[%s679 + $0x18] sm:$0xff]
    %684 = vmatpush.msra.mxu0 %v359
    %685 = vmatpush.msra.mxu0 %v355
    %686 = vmatpush.msra.mxu0 %v351
    %687 = vmatpush.msra.mxu0 %v347
    %688 = vmatpush.msra.mxu0 %v343
    %689 = vmatpush.msra.mxu0 %v339
    %690 = vmatpush.msra.mxu0 %v335
    %691 = vmatpush.msra.mxu0 %v331
    %692 = vmatpush.msra.mxu0 %v327
    %693 = vmatpush.msra.mxu0 %v323
    %694 = vmatpush.msra.mxu0 %v319
    %695 = vmatpush.msra.mxu0 %v315
    %696 = vmatpush.msra.mxu0 %v311
    %697 = vmatpush.msra.mxu0 %v307
    %698 = vmatpush.msra.mxu0 %v303
    %699 = vmatpush.msra.mxu0 %v299
    %700 = vmatmul.f32.gmra.mxu0 %v675
    %v701 = vpop.f32.mrf.mxu0
    %v702 = vadd.f32 0.0, %v701
    %703 = vdwg.mxu0
    %704 = vmatpush.msra.mxu0 %v360
    %705 = vmatpush.msra.mxu0 %v356
    %706 = vmatpush.msra.mxu0 %v352
    %707 = vmatpush.msra.mxu0 %v348
    %708 = vmatpush.msra.mxu0 %v344
    %709 = vmatpush.msra.mxu0 %v340
    %710 = vmatpush.msra.mxu0 %v336
    %711 = vmatpush.msra.mxu0 %v332
    %712 = vmatpush.msra.mxu0 %v328
    %713 = vmatpush.msra.mxu0 %v324
    %714 = vmatpush.msra.mxu0 %v320
    %715 = vmatpush.msra.mxu0 %v316
    %716 = vmatpush.msra.mxu0 %v312
    %717 = vmatpush.msra.mxu0 %v308
    %718 = vmatpush.msra.mxu0 %v304
    %719 = vmatpush.msra.mxu0 %v300
    %720 = vmatmul.f32.gmra.mxu0 %v675
    %v721 = vpop.f32.mrf.mxu0
    %v722 = vadd.f32 0.0, %v721
    %723 = vdwg.mxu0
    %724 = vmatpush.msra.mxu0 %v361
    %725 = vmatpush.msra.mxu0 %v357
    %726 = vmatpush.msra.mxu0 %v353
    %727 = vmatpush.msra.mxu0 %v349
    %728 = vmatpush.msra.mxu0 %v345
    %729 = vmatpush.msra.mxu0 %v341
    %730 = vmatpush.msra.mxu0 %v337
    %731 = vmatpush.msra.mxu0 %v333
    %732 = vmatpush.msra.mxu0 %v329
    %733 = vmatpush.msra.mxu0 %v325
    %734 = vmatpush.msra.mxu0 %v321
    %735 = vmatpush.msra.mxu0 %v317
    %736 = vmatpush.msra.mxu0 %v313
    %737 = vmatpush.msra.mxu0 %v309
    %738 = vmatpush.msra.mxu0 %v305
    %739 = vmatpush.msra.mxu0 %v301
    %740 = vmatmul.f32.gmra.mxu0 %v675
    %v741 = vpop.f32.mrf.mxu0
    %v742 = vadd.f32 0.0, %v741
    %743 = vdwg.mxu0
    %744 = vmatpush.msra.mxu0 %v362
    %745 = vmatpush.msra.mxu0 %v358
    %746 = vmatpush.msra.mxu0 %v354
    %747 = vmatpush.msra.mxu0 %v350
    %748 = vmatpush.msra.mxu0 %v346
    %749 = vmatpush.msra.mxu0 %v342
    %750 = vmatpush.msra.mxu0 %v338
    %751 = vmatpush.msra.mxu0 %v334
    %752 = vmatpush.msra.mxu0 %v330
    %753 = vmatpush.msra.mxu0 %v326
    %754 = vmatpush.msra.mxu0 %v322
    %755 = vmatpush.msra.mxu0 %v318
    %756 = vmatpush.msra.mxu0 %v314
    %757 = vmatpush.msra.mxu0 %v310
    %758 = vmatpush.msra.mxu0 %v306
    %759 = vmatpush.msra.mxu0 %v302
    %760 = vmatmul.f32.gmra.mxu0 %v675
    %v761 = vpop.f32.mrf.mxu0
    %v762 = vadd.f32 0.0, %v761
    %763 = vdwg.mxu0
    %v764 = vadd.f32 %v680, %v702
    %v765 = vadd.f32 %v681, %v722
    %v766 = vadd.f32 %v682, %v742
    %v767 = vadd.f32 %v683, %v762
    %v768 = vxor.u32 %v764, 2147483648
    %v769 = vmul.f32 %v768, 1.442695
    %v770 = vpow.pop %v769
    %v771 = vadd.f32 %v770, 1.0
    %v772 = vrcp.pop %v771
    %v773 = vmul.f32 %v771, %v772
    %v774 = vsub.f32 1.0, %v773
    %v775 = vmul.f32 %v772, %v774
    %v776 = vadd.f32 %v772, %v775
    %vm777 = vweird.f32 %v771
    %vm778 = vweird.f32 %v772
    %vm779 = vmor %vm777, %vm778
    %v780 = vsel %vm779, %v772, %v776
    %v781 = vand.u32 2147483647, %v771
    %vm782 = vcmp.eq.f32.partialorder %v781, 8.507059e+37
    %v783 = vand.u32 %v771, 2147483648
    %v784 = vor.u32 1.1754944e-38, %v783
    %v785 = vsel %vm782, %v784, %v780
    %v786 = vmul.f32 1.0, %v785
    %v787 = vxor.u32 %v765, 2147483648
    %v788 = vmul.f32 %v787, 1.442695
    %v789 = vpow.pop %v788
    %v790 = vadd.f32 %v789, 1.0
    %v791 = vrcp.pop %v790
    %v792 = vmul.f32 %v790, %v791
    %v793 = vsub.f32 1.0, %v792
    %v794 = vmul.f32 %v791, %v793
    %v795 = vadd.f32 %v791, %v794
    %vm796 = vweird.f32 %v790
    %vm797 = vweird.f32 %v791
    %vm798 = vmor %vm796, %vm797
    %v799 = vsel %vm798, %v791, %v795
    %v800 = vand.u32 2147483647, %v790
    %vm801 = vcmp.eq.f32.partialorder %v800, 8.507059e+37
    %v802 = vand.u32 %v790, 2147483648
    %v803 = vor.u32 1.1754944e-38, %v802
    %v804 = vsel %vm801, %v803, %v799
    %v805 = vmul.f32 1.0, %v804
    %v806 = vtanh.pop %v766
    %v807 = vxor.u32 %v767, 2147483648
    %v808 = vmul.f32 %v807, 1.442695
    %v809 = vpow.pop %v808
    %v810 = vadd.f32 %v809, 1.0
    %v811 = vrcp.pop %v810
    %v812 = vmul.f32 %v810, %v811
    %v813 = vsub.f32 1.0, %v812
    %v814 = vmul.f32 %v811, %v813
    %v815 = vadd.f32 %v811, %v814
    %vm816 = vweird.f32 %v810
    %vm817 = vweird.f32 %v811
    %vm818 = vmor %vm816, %vm817
    %v819 = vsel %vm818, %v811, %v815
    %v820 = vand.u32 2147483647, %v810
    %vm821 = vcmp.eq.f32.partialorder %v820, 8.507059e+37
    %v822 = vand.u32 %v810, 2147483648
    %v823 = vor.u32 1.1754944e-38, %v822
    %v824 = vsel %vm821, %v823, %v819
    %v825 = vmul.f32 1.0, %v824
    %v826 = vmul.f32 %v805, %v676
    %v827 = vmul.f32 %v786, %v806
    %v828 = vadd.f32 %v826, %v827
    %v829 = vtanh.pop %v828
    %v830 = vmul.f32 %v825, %v829
    %vm831 = vcmp.gt.s32.totalorder %v298, 5
    %v832 = vsel %vm831, %v830, %v675
    %v833 = vsel %vm831, %v828, %v676
    %s834 = smul.u32 4, 4
    %s835 = smul.addr %s834, 8
    %s836 = scalar_lea.vmem [#allocation2], %s835
    %v837 = vld [vmem:[%s836] sm:$0xff]
    %v838 = vld [vmem:[%s836 + $0x8] sm:$0xff]
    %v839 = vld [vmem:[%s836 + $0x10] sm:$0xff]
    %v840 = vld [vmem:[%s836 + $0x18] sm:$0xff]
    %841 = vmatpush.msra.mxu0 %v359
    %842 = vmatpush.msra.mxu0 %v355
    %843 = vmatpush.msra.mxu0 %v351
    %844 = vmatpush.msra.mxu0 %v347
    %845 = vmatpush.msra.mxu0 %v343
    %846 = vmatpush.msra.mxu0 %v339
    %847 = vmatpush.msra.mxu0 %v335
    %848 = vmatpush.msra.mxu0 %v331
    %849 = vmatpush.msra.mxu0 %v327
    %850 = vmatpush.msra.mxu0 %v323
    %851 = vmatpush.msra.mxu0 %v319
    %852 = vmatpush.msra.mxu0 %v315
    %853 = vmatpush.msra.mxu0 %v311
    %854 = vmatpush.msra.mxu0 %v307
    %855 = vmatpush.msra.mxu0 %v303
    %856 = vmatpush.msra.mxu0 %v299
    %857 = vmatmul.f32.gmra.mxu0 %v832
    %v858 = vpop.f32.mrf.mxu0
    %v859 = vadd.f32 0.0, %v858
    %860 = vdwg.mxu0
    %861 = vmatpush.msra.mxu0 %v360
    %862 = vmatpush.msra.mxu0 %v356
    %863 = vmatpush.msra.mxu0 %v352
    %864 = vmatpush.msra.mxu0 %v348
    %865 = vmatpush.msra.mxu0 %v344
    %866 = vmatpush.msra.mxu0 %v340
    %867 = vmatpush.msra.mxu0 %v336
    %868 = vmatpush.msra.mxu0 %v332
    %869 = vmatpush.msra.mxu0 %v328
    %870 = vmatpush.msra.mxu0 %v324
    %871 = vmatpush.msra.mxu0 %v320
    %872 = vmatpush.msra.mxu0 %v316
    %873 = vmatpush.msra.mxu0 %v312
    %874 = vmatpush.msra.mxu0 %v308
    %875 = vmatpush.msra.mxu0 %v304
    %876 = vmatpush.msra.mxu0 %v300
    %877 = vmatmul.f32.gmra.mxu0 %v832
    %v878 = vpop.f32.mrf.mxu0
    %v879 = vadd.f32 0.0, %v878
    %880 = vdwg.mxu0
    %881 = vmatpush.msra.mxu0 %v361
    %882 = vmatpush.msra.mxu0 %v357
    %883 = vmatpush.msra.mxu0 %v353
    %884 = vmatpush.msra.mxu0 %v349
    %885 = vmatpush.msra.mxu0 %v345
    %886 = vmatpush.msra.mxu0 %v341
    %887 = vmatpush.msra.mxu0 %v337
    %888 = vmatpush.msra.mxu0 %v333
    %889 = vmatpush.msra.mxu0 %v329
    %890 = vmatpush.msra.mxu0 %v325
    %891 = vmatpush.msra.mxu0 %v321
    %892 = vmatpush.msra.mxu0 %v317
    %893 = vmatpush.msra.mxu0 %v313
    %894 = vmatpush.msra.mxu0 %v309
    %895 = vmatpush.msra.mxu0 %v305
    %896 = vmatpush.msra.mxu0 %v301
    %897 = vmatmul.f32.gmra.mxu0 %v832
    %v898 = vpop.f32.mrf.mxu0
    %v899 = vadd.f32 0.0, %v898
    %900 = vdwg.mxu0
    %901 = vmatpush.msra.mxu0 %v362
    %902 = vmatpush.msra.mxu0 %v358
    %903 = vmatpush.msra.mxu0 %v354
    %904 = vmatpush.msra.mxu0 %v350
    %905 = vmatpush.msra.mxu0 %v346
    %906 = vmatpush.msra.mxu0 %v342
    %907 = vmatpush.msra.mxu0 %v338
    %908 = vmatpush.msra.mxu0 %v334
    %909 = vmatpush.msra.mxu0 %v330
    %910 = vmatpush.msra.mxu0 %v326
    %911 = vmatpush.msra.mxu0 %v322
    %912 = vmatpush.msra.mxu0 %v318
    %913 = vmatpush.msra.mxu0 %v314
    %914 = vmatpush.msra.mxu0 %v310
    %915 = vmatpush.msra.mxu0 %v306
    %916 = vmatpush.msra.mxu0 %v302
    %917 = vmatmul.f32.gmra.mxu0 %v832
    %v918 = vpop.f32.mrf.mxu0
    %v919 = vadd.f32 0.0, %v918
    %920 = vdwg.mxu0
    %v921 = vadd.f32 %v837, %v859
    %v922 = vadd.f32 %v838, %v879
    %v923 = vadd.f32 %v839, %v899
    %v924 = vadd.f32 %v840, %v919
    %v925 = vxor.u32 %v921, 2147483648
    %v926 = vmul.f32 %v925, 1.442695
    %v927 = vpow.pop %v926
    %v928 = vadd.f32 %v927, 1.0
    %v929 = vrcp.pop %v928
    %v930 = vmul.f32 %v928, %v929
    %v931 = vsub.f32 1.0, %v930
    %v932 = vmul.f32 %v929, %v931
    %v933 = vadd.f32 %v929, %v932
    %vm934 = vweird.f32 %v928
    %vm935 = vweird.f32 %v929
    %vm936 = vmor %vm934, %vm935
    %v937 = vsel %vm936, %v929, %v933
    %v938 = vand.u32 2147483647, %v928
    %vm939 = vcmp.eq.f32.partialorder %v938, 8.507059e+37
    %v940 = vand.u32 %v928, 2147483648
    %v941 = vor.u32 1.1754944e-38, %v940
    %v942 = vsel %vm939, %v941, %v937
    %v943 = vmul.f32 1.0, %v942
    %v944 = vxor.u32 %v922, 2147483648
    %v945 = vmul.f32 %v944, 1.442695
    %v946 = vpow.pop %v945
    %v947 = vadd.f32 %v946, 1.0
    %v948 = vrcp.pop %v947
    %v949 = vmul.f32 %v947, %v948
    %v950 = vsub.f32 1.0, %v949
    %v951 = vmul.f32 %v948, %v950
    %v952 = vadd.f32 %v948, %v951
    %vm953 = vweird.f32 %v947
    %vm954 = vweird.f32 %v948
    %vm955 = vmor %vm953, %vm954
    %v956 = vsel %vm955, %v948, %v952
    %v957 = vand.u32 2147483647, %v947
    %vm958 = vcmp.eq.f32.partialorder %v957, 8.507059e+37
    %v959 = vand.u32 %v947, 2147483648
    %v960 = vor.u32 1.1754944e-38, %v959
    %v961 = vsel %vm958, %v960, %v956
    %v962 = vmul.f32 1.0, %v961
    %v963 = vtanh.pop %v923
    %v964 = vxor.u32 %v924, 2147483648
    %v965 = vmul.f32 %v964, 1.442695
    %v966 = vpow.pop %v965
    %v967 = vadd.f32 %v966, 1.0
    %v968 = vrcp.pop %v967
    %v969 = vmul.f32 %v967, %v968
    %v970 = vsub.f32 1.0, %v969
    %v971 = vmul.f32 %v968, %v970
    %v972 = vadd.f32 %v968, %v971
    %vm973 = vweird.f32 %v967
    %vm974 = vweird.f32 %v968
    %vm975 = vmor %vm973, %vm974
    %v976 = vsel %vm975, %v968, %v972
    %v977 = vand.u32 2147483647, %v967
    %vm978 = vcmp.eq.f32.partialorder %v977, 8.507059e+37
    %v979 = vand.u32 %v967, 2147483648
    %v980 = vor.u32 1.1754944e-38, %v979
    %v981 = vsel %vm978, %v980, %v976
    %v982 = vmul.f32 1.0, %v981
    %v983 = vmul.f32 %v962, %v833
    %v984 = vmul.f32 %v943, %v963
    %v985 = vadd.f32 %v983, %v984
    %v986 = vtanh.pop %v985
    %v987 = vmul.f32 %v982, %v986
    %vm988 = vcmp.gt.s32.totalorder %v298, 4
    %v989 = vsel %vm988, %v987, %v832
    %v990 = vsel %vm988, %v985, %v833
    %s991 = smul.u32 3, 4
    %s992 = smul.addr %s991, 8
    %s993 = scalar_lea.vmem [#allocation2], %s992
    %v994 = vld [vmem:[%s993] sm:$0xff]
    %v995 = vld [vmem:[%s993 + $0x8] sm:$0xff]
    %v996 = vld [vmem:[%s993 + $0x10] sm:$0xff]
    %v997 = vld [vmem:[%s993 + $0x18] sm:$0xff]
    %998 = vmatpush.msra.mxu0 %v359
    %999 = vmatpush.msra.mxu0 %v355
    %1000 = vmatpush.msra.mxu0 %v351
    %1001 = vmatpush.msra.mxu0 %v347
    %1002 = vmatpush.msra.mxu0 %v343
    %1003 = vmatpush.msra.mxu0 %v339
    %1004 = vmatpush.msra.mxu0 %v335
    %1005 = vmatpush.msra.mxu0 %v331
    %1006 = vmatpush.msra.mxu0 %v327
    %1007 = vmatpush.msra.mxu0 %v323
    %1008 = vmatpush.msra.mxu0 %v319
    %1009 = vmatpush.msra.mxu0 %v315
    %1010 = vmatpush.msra.mxu0 %v311
    %1011 = vmatpush.msra.mxu0 %v307
    %1012 = vmatpush.msra.mxu0 %v303
    %1013 = vmatpush.msra.mxu0 %v299
    %1014 = vmatmul.f32.gmra.mxu0 %v989
    %v1015 = vpop.f32.mrf.mxu0
    %v1016 = vadd.f32 0.0, %v1015
    %1017 = vdwg.mxu0
    %1018 = vmatpush.msra.mxu0 %v360
    %1019 = vmatpush.msra.mxu0 %v356
    %1020 = vmatpush.msra.mxu0 %v352
    %1021 = vmatpush.msra.mxu0 %v348
    %1022 = vmatpush.msra.mxu0 %v344
    %1023 = vmatpush.msra.mxu0 %v340
    %1024 = vmatpush.msra.mxu0 %v336
    %1025 = vmatpush.msra.mxu0 %v332
    %1026 = vmatpush.msra.mxu0 %v328
    %1027 = vmatpush.msra.mxu0 %v324
    %1028 = vmatpush.msra.mxu0 %v320
    %1029 = vmatpush.msra.mxu0 %v316
    %1030 = vmatpush.msra.mxu0 %v312
    %1031 = vmatpush.msra.mxu0 %v308
    %1032 = vmatpush.msra.mxu0 %v304
    %1033 = vmatpush.msra.mxu0 %v300
    %1034 = vmatmul.f32.gmra.mxu0 %v989
    %v1035 = vpop.f32.mrf.mxu0
    %v1036 = vadd.f32 0.0, %v1035
    %1037 = vdwg.mxu0
    %1038 = vmatpush.msra.mxu0 %v361
    %1039 = vmatpush.msra.mxu0 %v357
    %1040 = vmatpush.msra.mxu0 %v353
    %1041 = vmatpush.msra.mxu0 %v349
    %1042 = vmatpush.msra.mxu0 %v345
    %1043 = vmatpush.msra.mxu0 %v341
    %1044 = vmatpush.msra.mxu0 %v337
    %1045 = vmatpush.msra.mxu0 %v333
    %1046 = vmatpush.msra.mxu0 %v329
    %1047 = vmatpush.msra.mxu0 %v325
    %1048 = vmatpush.msra.mxu0 %v321
    %1049 = vmatpush.msra.mxu0 %v317
    %1050 = vmatpush.msra.mxu0 %v313
    %1051 = vmatpush.msra.mxu0 %v309
    %1052 = vmatpush.msra.mxu0 %v305
    %1053 = vmatpush.msra.mxu0 %v301
    %1054 = vmatmul.f32.gmra.mxu0 %v989
    %v1055 = vpop.f32.mrf.mxu0
    %v1056 = vadd.f32 0.0, %v1055
    %1057 = vdwg.mxu0
    %1058 = vmatpush.msra.mxu0 %v362
    %1059 = vmatpush.msra.mxu0 %v358
    %1060 = vmatpush.msra.mxu0 %v354
    %1061 = vmatpush.msra.mxu0 %v350
    %1062 = vmatpush.msra.mxu0 %v346
    %1063 = vmatpush.msra.mxu0 %v342
    %1064 = vmatpush.msra.mxu0 %v338
    %1065 = vmatpush.msra.mxu0 %v334
    %1066 = vmatpush.msra.mxu0 %v330
    %1067 = vmatpush.msra.mxu0 %v326
    %1068 = vmatpush.msra.mxu0 %v322
    %1069 = vmatpush.msra.mxu0 %v318
    %1070 = vmatpush.msra.mxu0 %v314
    %1071 = vmatpush.msra.mxu0 %v310
    %1072 = vmatpush.msra.mxu0 %v306
    %1073 = vmatpush.msra.mxu0 %v302
    %1074 = vmatmul.f32.gmra.mxu0 %v989
    %v1075 = vpop.f32.mrf.mxu0
    %v1076 = vadd.f32 0.0, %v1075
    %1077 = vdwg.mxu0
    %v1078 = vadd.f32 %v994, %v1016
    %v1079 = vadd.f32 %v995, %v1036
    %v1080 = vadd.f32 %v996, %v1056
    %v1081 = vadd.f32 %v997, %v1076
    %v1082 = vxor.u32 %v1078, 2147483648
    %v1083 = vmul.f32 %v1082, 1.442695
    %v1084 = vpow.pop %v1083
    %v1085 = vadd.f32 %v1084, 1.0
    %v1086 = vrcp.pop %v1085
    %v1087 = vmul.f32 %v1085, %v1086
    %v1088 = vsub.f32 1.0, %v1087
    %v1089 = vmul.f32 %v1086, %v1088
    %v1090 = vadd.f32 %v1086, %v1089
    %vm1091 = vweird.f32 %v1085
    %vm1092 = vweird.f32 %v1086
    %vm1093 = vmor %vm1091, %vm1092
    %v1094 = vsel %vm1093, %v1086, %v1090
    %v1095 = vand.u32 2147483647, %v1085
    %vm1096 = vcmp.eq.f32.partialorder %v1095, 8.507059e+37
    %v1097 = vand.u32 %v1085, 2147483648
    %v1098 = vor.u32 1.1754944e-38, %v1097
    %v1099 = vsel %vm1096, %v1098, %v1094
    %v1100 = vmul.f32 1.0, %v1099
    %v1101 = vxor.u32 %v1079, 2147483648
    %v1102 = vmul.f32 %v1101, 1.442695
    %v1103 = vpow.pop %v1102
    %v1104 = vadd.f32 %v1103, 1.0
    %v1105 = vrcp.pop %v1104
    %v1106 = vmul.f32 %v1104, %v1105
    %v1107 = vsub.f32 1.0, %v1106
    %v1108 = vmul.f32 %v1105, %v1107
    %v1109 = vadd.f32 %v1105, %v1108
    %vm1110 = vweird.f32 %v1104
    %vm1111 = vweird.f32 %v1105
    %vm1112 = vmor %vm1110, %vm1111
    %v1113 = vsel %vm1112, %v1105, %v1109
    %v1114 = vand.u32 2147483647, %v1104
    %vm1115 = vcmp.eq.f32.partialorder %v1114, 8.507059e+37
    %v1116 = vand.u32 %v1104, 2147483648
    %v1117 = vor.u32 1.1754944e-38, %v1116
    %v1118 = vsel %vm1115, %v1117, %v1113
    %v1119 = vmul.f32 1.0, %v1118
    %v1120 = vtanh.pop %v1080
    %v1121 = vxor.u32 %v1081, 2147483648
    %v1122 = vmul.f32 %v1121, 1.442695
    %v1123 = vpow.pop %v1122
    %v1124 = vadd.f32 %v1123, 1.0
    %v1125 = vrcp.pop %v1124
    %v1126 = vmul.f32 %v1124, %v1125
    %v1127 = vsub.f32 1.0, %v1126
    %v1128 = vmul.f32 %v1125, %v1127
    %v1129 = vadd.f32 %v1125, %v1128
    %vm1130 = vweird.f32 %v1124
    %vm1131 = vweird.f32 %v1125
    %vm1132 = vmor %vm1130, %vm1131
    %v1133 = vsel %vm1132, %v1125, %v1129
    %v1134 = vand.u32 2147483647, %v1124
    %vm1135 = vcmp.eq.f32.partialorder %v1134, 8.507059e+37
    %v1136 = vand.u32 %v1124, 2147483648
    %v1137 = vor.u32 1.1754944e-38, %v1136
    %v1138 = vsel %vm1135, %v1137, %v1133
    %v1139 = vmul.f32 1.0, %v1138
    %v1140 = vmul.f32 %v1119, %v990
    %v1141 = vmul.f32 %v1100, %v1120
    %v1142 = vadd.f32 %v1140, %v1141
    %v1143 = vtanh.pop %v1142
    %v1144 = vmul.f32 %v1139, %v1143
    %vm1145 = vcmp.gt.s32.totalorder %v298, 3
    %v1146 = vsel %vm1145, %v1144, %v989
    %v1147 = vsel %vm1145, %v1142, %v990
    %s1148 = smul.u32 2, 4
    %s1149 = smul.addr %s1148, 8
    %s1150 = scalar_lea.vmem [#allocation2], %s1149
    %v1151 = vld [vmem:[%s1150] sm:$0xff]
    %v1152 = vld [vmem:[%s1150 + $0x8] sm:$0xff]
    %v1153 = vld [vmem:[%s1150 + $0x10] sm:$0xff]
    %v1154 = vld [vmem:[%s1150 + $0x18] sm:$0xff]
    %1155 = vmatpush.msra.mxu0 %v359
    %1156 = vmatpush.msra.mxu0 %v355
    %1157 = vmatpush.msra.mxu0 %v351
    %1158 = vmatpush.msra.mxu0 %v347
    %1159 = vmatpush.msra.mxu0 %v343
    %1160 = vmatpush.msra.mxu0 %v339
    %1161 = vmatpush.msra.mxu0 %v335
    %1162 = vmatpush.msra.mxu0 %v331
    %1163 = vmatpush.msra.mxu0 %v327
    %1164 = vmatpush.msra.mxu0 %v323
    %1165 = vmatpush.msra.mxu0 %v319
    %1166 = vmatpush.msra.mxu0 %v315
    %1167 = vmatpush.msra.mxu0 %v311
    %1168 = vmatpush.msra.mxu0 %v307
    %1169 = vmatpush.msra.mxu0 %v303
    %1170 = vmatpush.msra.mxu0 %v299
    %1171 = vmatmul.f32.gmra.mxu0 %v1146
    %v1172 = vpop.f32.mrf.mxu0
    %v1173 = vadd.f32 0.0, %v1172
    %1174 = vdwg.mxu0
    %1175 = vmatpush.msra.mxu0 %v360
    %1176 = vmatpush.msra.mxu0 %v356
    %1177 = vmatpush.msra.mxu0 %v352
    %1178 = vmatpush.msra.mxu0 %v348
    %1179 = vmatpush.msra.mxu0 %v344
    %1180 = vmatpush.msra.mxu0 %v340
    %1181 = vmatpush.msra.mxu0 %v336
    %1182 = vmatpush.msra.mxu0 %v332
    %1183 = vmatpush.msra.mxu0 %v328
    %1184 = vmatpush.msra.mxu0 %v324
    %1185 = vmatpush.msra.mxu0 %v320
    %1186 = vmatpush.msra.mxu0 %v316
    %1187 = vmatpush.msra.mxu0 %v312
    %1188 = vmatpush.msra.mxu0 %v308
    %1189 = vmatpush.msra.mxu0 %v304
    %1190 = vmatpush.msra.mxu0 %v300
    %1191 = vmatmul.f32.gmra.mxu0 %v1146
    %v1192 = vpop.f32.mrf.mxu0
    %v1193 = vadd.f32 0.0, %v1192
    %1194 = vdwg.mxu0
    %1195 = vmatpush.msra.mxu0 %v361
    %1196 = vmatpush.msra.mxu0 %v357
    %1197 = vmatpush.msra.mxu0 %v353
    %1198 = vmatpush.msra.mxu0 %v349
    %1199 = vmatpush.msra.mxu0 %v345
    %1200 = vmatpush.msra.mxu0 %v341
    %1201 = vmatpush.msra.mxu0 %v337
    %1202 = vmatpush.msra.mxu0 %v333
    %1203 = vmatpush.msra.mxu0 %v329
    %1204 = vmatpush.msra.mxu0 %v325
    %1205 = vmatpush.msra.mxu0 %v321
    %1206 = vmatpush.msra.mxu0 %v317
    %1207 = vmatpush.msra.mxu0 %v313
    %1208 = vmatpush.msra.mxu0 %v309
    %1209 = vmatpush.msra.mxu0 %v305
    %1210 = vmatpush.msra.mxu0 %v301
    %1211 = vmatmul.f32.gmra.mxu0 %v1146
    %v1212 = vpop.f32.mrf.mxu0
    %v1213 = vadd.f32 0.0, %v1212
    %1214 = vdwg.mxu0
    %1215 = vmatpush.msra.mxu0 %v362
    %1216 = vmatpush.msra.mxu0 %v358
    %1217 = vmatpush.msra.mxu0 %v354
    %1218 = vmatpush.msra.mxu0 %v350
    %1219 = vmatpush.msra.mxu0 %v346
    %1220 = vmatpush.msra.mxu0 %v342
    %1221 = vmatpush.msra.mxu0 %v338
    %1222 = vmatpush.msra.mxu0 %v334
    %1223 = vmatpush.msra.mxu0 %v330
    %1224 = vmatpush.msra.mxu0 %v326
    %1225 = vmatpush.msra.mxu0 %v322
    %1226 = vmatpush.msra.mxu0 %v318
    %1227 = vmatpush.msra.mxu0 %v314
    %1228 = vmatpush.msra.mxu0 %v310
    %1229 = vmatpush.msra.mxu0 %v306
    %1230 = vmatpush.msra.mxu0 %v302
    %1231 = vmatmul.f32.gmra.mxu0 %v1146
    %v1232 = vpop.f32.mrf.mxu0
    %v1233 = vadd.f32 0.0, %v1232
    %1234 = vdwg.mxu0
    %v1235 = vadd.f32 %v1151, %v1173
    %v1236 = vadd.f32 %v1152, %v1193
    %v1237 = vadd.f32 %v1153, %v1213
    %v1238 = vadd.f32 %v1154, %v1233
    %v1239 = vxor.u32 %v1235, 2147483648
    %v1240 = vmul.f32 %v1239, 1.442695
    %v1241 = vpow.pop %v1240
    %v1242 = vadd.f32 %v1241, 1.0
    %v1243 = vrcp.pop %v1242
    %v1244 = vmul.f32 %v1242, %v1243
    %v1245 = vsub.f32 1.0, %v1244
    %v1246 = vmul.f32 %v1243, %v1245
    %v1247 = vadd.f32 %v1243, %v1246
    %vm1248 = vweird.f32 %v1242
    %vm1249 = vweird.f32 %v1243
    %vm1250 = vmor %vm1248, %vm1249
    %v1251 = vsel %vm1250, %v1243, %v1247
    %v1252 = vand.u32 2147483647, %v1242
    %vm1253 = vcmp.eq.f32.partialorder %v1252, 8.507059e+37
    %v1254 = vand.u32 %v1242, 2147483648
    %v1255 = vor.u32 1.1754944e-38, %v1254
    %v1256 = vsel %vm1253, %v1255, %v1251
    %v1257 = vmul.f32 1.0, %v1256
    %v1258 = vxor.u32 %v1236, 2147483648
    %v1259 = vmul.f32 %v1258, 1.442695
    %v1260 = vpow.pop %v1259
    %v1261 = vadd.f32 %v1260, 1.0
    %v1262 = vrcp.pop %v1261
    %v1263 = vmul.f32 %v1261, %v1262
    %v1264 = vsub.f32 1.0, %v1263
    %v1265 = vmul.f32 %v1262, %v1264
    %v1266 = vadd.f32 %v1262, %v1265
    %vm1267 = vweird.f32 %v1261
    %vm1268 = vweird.f32 %v1262
    %vm1269 = vmor %vm1267, %vm1268
    %v1270 = vsel %vm1269, %v1262, %v1266
    %v1271 = vand.u32 2147483647, %v1261
    %vm1272 = vcmp.eq.f32.partialorder %v1271, 8.507059e+37
    %v1273 = vand.u32 %v1261, 2147483648
    %v1274 = vor.u32 1.1754944e-38, %v1273
    %v1275 = vsel %vm1272, %v1274, %v1270
    %v1276 = vmul.f32 1.0, %v1275
    %v1277 = vtanh.pop %v1237
    %v1278 = vxor.u32 %v1238, 2147483648
    %v1279 = vmul.f32 %v1278, 1.442695
    %v1280 = vpow.pop %v1279
    %v1281 = vadd.f32 %v1280, 1.0
    %v1282 = vrcp.pop %v1281
    %v1283 = vmul.f32 %v1281, %v1282
    %v1284 = vsub.f32 1.0, %v1283
    %v1285 = vmul.f32 %v1282, %v1284
    %v1286 = vadd.f32 %v1282, %v1285
    %vm1287 = vweird.f32 %v1281
    %vm1288 = vweird.f32 %v1282
    %vm1289 = vmor %vm1287, %vm1288
    %v1290 = vsel %vm1289, %v1282, %v1286
    %v1291 = vand.u32 2147483647, %v1281
    %vm1292 = vcmp.eq.f32.partialorder %v1291, 8.507059e+37
    %v1293 = vand.u32 %v1281, 2147483648
    %v1294 = vor.u32 1.1754944e-38, %v1293
    %v1295 = vsel %vm1292, %v1294, %v1290
    %v1296 = vmul.f32 1.0, %v1295
    %v1297 = vmul.f32 %v1276, %v1147
    %v1298 = vmul.f32 %v1257, %v1277
    %v1299 = vadd.f32 %v1297, %v1298
    %v1300 = vtanh.pop %v1299
    %v1301 = vmul.f32 %v1296, %v1300
    %vm1302 = vcmp.gt.s32.totalorder %v298, 2
    %v1303 = vsel %vm1302, %v1301, %v1146
    %v1304 = vsel %vm1302, %v1299, %v1147
    %s1305 = smul.u32 1, 4
    %s1306 = smul.addr %s1305, 8
    %s1307 = scalar_lea.vmem [#allocation2], %s1306
    %v1308 = vld [vmem:[%s1307] sm:$0xff]
    %v1309 = vld [vmem:[%s1307 + $0x8] sm:$0xff]
    %v1310 = vld [vmem:[%s1307 + $0x10] sm:$0xff]
    %v1311 = vld [vmem:[%s1307 + $0x18] sm:$0xff]
    %1312 = vmatpush.msra.mxu0 %v359
    %1313 = vmatpush.msra.mxu0 %v355
    %1314 = vmatpush.msra.mxu0 %v351
    %1315 = vmatpush.msra.mxu0 %v347
    %1316 = vmatpush.msra.mxu0 %v343
    %1317 = vmatpush.msra.mxu0 %v339
    %1318 = vmatpush.msra.mxu0 %v335
    %1319 = vmatpush.msra.mxu0 %v331
    %1320 = vmatpush.msra.mxu0 %v327
    %1321 = vmatpush.msra.mxu0 %v323
    %1322 = vmatpush.msra.mxu0 %v319
    %1323 = vmatpush.msra.mxu0 %v315
    %1324 = vmatpush.msra.mxu0 %v311
    %1325 = vmatpush.msra.mxu0 %v307
    %1326 = vmatpush.msra.mxu0 %v303
    %1327 = vmatpush.msra.mxu0 %v299
    %1328 = vmatmul.f32.gmra.mxu0 %v1303
    %v1329 = vpop.f32.mrf.mxu0
    %v1330 = vadd.f32 0.0, %v1329
    %1331 = vdwg.mxu0
    %1332 = vmatpush.msra.mxu0 %v360
    %1333 = vmatpush.msra.mxu0 %v356
    %1334 = vmatpush.msra.mxu0 %v352
    %1335 = vmatpush.msra.mxu0 %v348
    %1336 = vmatpush.msra.mxu0 %v344
    %1337 = vmatpush.msra.mxu0 %v340
    %1338 = vmatpush.msra.mxu0 %v336
    %1339 = vmatpush.msra.mxu0 %v332
    %1340 = vmatpush.msra.mxu0 %v328
    %1341 = vmatpush.msra.mxu0 %v324
    %1342 = vmatpush.msra.mxu0 %v320
    %1343 = vmatpush.msra.mxu0 %v316
    %1344 = vmatpush.msra.mxu0 %v312
    %1345 = vmatpush.msra.mxu0 %v308
    %1346 = vmatpush.msra.mxu0 %v304
    %1347 = vmatpush.msra.mxu0 %v300
    %1348 = vmatmul.f32.gmra.mxu0 %v1303
    %v1349 = vpop.f32.mrf.mxu0
    %v1350 = vadd.f32 0.0, %v1349
    %1351 = vdwg.mxu0
    %1352 = vmatpush.msra.mxu0 %v361
    %1353 = vmatpush.msra.mxu0 %v357
    %1354 = vmatpush.msra.mxu0 %v353
    %1355 = vmatpush.msra.mxu0 %v349
    %1356 = vmatpush.msra.mxu0 %v345
    %1357 = vmatpush.msra.mxu0 %v341
    %1358 = vmatpush.msra.mxu0 %v337
    %1359 = vmatpush.msra.mxu0 %v333
    %1360 = vmatpush.msra.mxu0 %v329
    %1361 = vmatpush.msra.mxu0 %v325
    %1362 = vmatpush.msra.mxu0 %v321
    %1363 = vmatpush.msra.mxu0 %v317
    %1364 = vmatpush.msra.mxu0 %v313
    %1365 = vmatpush.msra.mxu0 %v309
    %1366 = vmatpush.msra.mxu0 %v305
    %1367 = vmatpush.msra.mxu0 %v301
    %1368 = vmatmul.f32.gmra.mxu0 %v1303
    %v1369 = vpop.f32.mrf.mxu0
    %v1370 = vadd.f32 0.0, %v1369
    %1371 = vdwg.mxu0
    %1372 = vmatpush.msra.mxu0 %v362
    %1373 = vmatpush.msra.mxu0 %v358
    %1374 = vmatpush.msra.mxu0 %v354
    %1375 = vmatpush.msra.mxu0 %v350
    %1376 = vmatpush.msra.mxu0 %v346
    %1377 = vmatpush.msra.mxu0 %v342
    %1378 = vmatpush.msra.mxu0 %v338
    %1379 = vmatpush.msra.mxu0 %v334
    %1380 = vmatpush.msra.mxu0 %v330
    %1381 = vmatpush.msra.mxu0 %v326
    %1382 = vmatpush.msra.mxu0 %v322
    %1383 = vmatpush.msra.mxu0 %v318
    %1384 = vmatpush.msra.mxu0 %v314
    %1385 = vmatpush.msra.mxu0 %v310
    %1386 = vmatpush.msra.mxu0 %v306
    %1387 = vmatpush.msra.mxu0 %v302
    %1388 = vmatmul.f32.gmra.mxu0 %v1303
    %v1389 = vpop.f32.mrf.mxu0
    %v1390 = vadd.f32 0.0, %v1389
    %1391 = vdwg.mxu0
    %v1392 = vadd.f32 %v1308, %v1330
    %v1393 = vadd.f32 %v1309, %v1350
    %v1394 = vadd.f32 %v1310, %v1370
    %v1395 = vadd.f32 %v1311, %v1390
    %v1396 = vxor.u32 %v1392, 2147483648
    %v1397 = vmul.f32 %v1396, 1.442695
    %v1398 = vpow.pop %v1397
    %v1399 = vadd.f32 %v1398, 1.0
    %v1400 = vrcp.pop %v1399
    %v1401 = vmul.f32 %v1399, %v1400
    %v1402 = vsub.f32 1.0, %v1401
    %v1403 = vmul.f32 %v1400, %v1402
    %v1404 = vadd.f32 %v1400, %v1403
    %vm1405 = vweird.f32 %v1399
    %vm1406 = vweird.f32 %v1400
    %vm1407 = vmor %vm1405, %vm1406
    %v1408 = vsel %vm1407, %v1400, %v1404
    %v1409 = vand.u32 2147483647, %v1399
    %vm1410 = vcmp.eq.f32.partialorder %v1409, 8.507059e+37
    %v1411 = vand.u32 %v1399, 2147483648
    %v1412 = vor.u32 1.1754944e-38, %v1411
    %v1413 = vsel %vm1410, %v1412, %v1408
    %v1414 = vmul.f32 1.0, %v1413
    %v1415 = vxor.u32 %v1393, 2147483648
    %v1416 = vmul.f32 %v1415, 1.442695
    %v1417 = vpow.pop %v1416
    %v1418 = vadd.f32 %v1417, 1.0
    %v1419 = vrcp.pop %v1418
    %v1420 = vmul.f32 %v1418, %v1419
    %v1421 = vsub.f32 1.0, %v1420
    %v1422 = vmul.f32 %v1419, %v1421
    %v1423 = vadd.f32 %v1419, %v1422
    %vm1424 = vweird.f32 %v1418
    %vm1425 = vweird.f32 %v1419
    %vm1426 = vmor %vm1424, %vm1425
    %v1427 = vsel %vm1426, %v1419, %v1423
    %v1428 = vand.u32 2147483647, %v1418
    %vm1429 = vcmp.eq.f32.partialorder %v1428, 8.507059e+37
    %v1430 = vand.u32 %v1418, 2147483648
    %v1431 = vor.u32 1.1754944e-38, %v1430
    %v1432 = vsel %vm1429, %v1431, %v1427
    %v1433 = vmul.f32 1.0, %v1432
    %v1434 = vtanh.pop %v1394
    %v1435 = vxor.u32 %v1395, 2147483648
    %v1436 = vmul.f32 %v1435, 1.442695
    %v1437 = vpow.pop %v1436
    %v1438 = vadd.f32 %v1437, 1.0
    %v1439 = vrcp.pop %v1438
    %v1440 = vmul.f32 %v1438, %v1439
    %v1441 = vsub.f32 1.0, %v1440
    %v1442 = vmul.f32 %v1439, %v1441
    %v1443 = vadd.f32 %v1439, %v1442
    %vm1444 = vweird.f32 %v1438
    %vm1445 = vweird.f32 %v1439
    %vm1446 = vmor %vm1444, %vm1445
    %v1447 = vsel %vm1446, %v1439, %v1443
    %v1448 = vand.u32 2147483647, %v1438
    %vm1449 = vcmp.eq.f32.partialorder %v1448, 8.507059e+37
    %v1450 = vand.u32 %v1438, 2147483648
    %v1451 = vor.u32 1.1754944e-38, %v1450
    %v1452 = vsel %vm1449, %v1451, %v1447
    %v1453 = vmul.f32 1.0, %v1452
    %v1454 = vmul.f32 %v1433, %v1304
    %v1455 = vmul.f32 %v1414, %v1434
    %v1456 = vadd.f32 %v1454, %v1455
    %v1457 = vtanh.pop %v1456
    %v1458 = vmul.f32 %v1453, %v1457
    %vm1459 = vcmp.gt.s32.totalorder %v298, 1
    %v1460 = vsel %vm1459, %v1458, %v1303
    %v1461 = vsel %vm1459, %v1456, %v1304
    %s1462 = smul.u32 0, 4
    %s1463 = smul.addr %s1462, 8
    %s1464 = scalar_lea.vmem [#allocation2], %s1463
    %v1465 = vld [vmem:[%s1464] sm:$0xff]
    %v1466 = vld [vmem:[%s1464 + $0x8] sm:$0xff]
    %v1467 = vld [vmem:[%s1464 + $0x10] sm:$0xff]
    %v1468 = vld [vmem:[%s1464 + $0x18] sm:$0xff]
    %1469 = vmatpush.msra.mxu0 %v359
    %1470 = vmatpush.msra.mxu0 %v355
    %1471 = vmatpush.msra.mxu0 %v351
    %1472 = vmatpush.msra.mxu0 %v347
    %1473 = vmatpush.msra.mxu0 %v343
    %1474 = vmatpush.msra.mxu0 %v339
    %1475 = vmatpush.msra.mxu0 %v335
    %1476 = vmatpush.msra.mxu0 %v331
    %1477 = vmatpush.msra.mxu0 %v327
    %1478 = vmatpush.msra.mxu0 %v323
    %1479 = vmatpush.msra.mxu0 %v319
    %1480 = vmatpush.msra.mxu0 %v315
    %1481 = vmatpush.msra.mxu0 %v311
    %1482 = vmatpush.msra.mxu0 %v307
    %1483 = vmatpush.msra.mxu0 %v303
    %1484 = vmatpush.msra.mxu0 %v299
    %1485 = vmatmul.f32.gmra.mxu0 %v1460
    %v1486 = vpop.f32.mrf.mxu0
    %v1487 = vadd.f32 0.0, %v1486
    %1488 = vdwg.mxu0
    %1489 = vmatpush.msra.mxu0 %v360
    %1490 = vmatpush.msra.mxu0 %v356
    %1491 = vmatpush.msra.mxu0 %v352
    %1492 = vmatpush.msra.mxu0 %v348
    %1493 = vmatpush.msra.mxu0 %v344
    %1494 = vmatpush.msra.mxu0 %v340
    %1495 = vmatpush.msra.mxu0 %v336
    %1496 = vmatpush.msra.mxu0 %v332
    %1497 = vmatpush.msra.mxu0 %v328
    %1498 = vmatpush.msra.mxu0 %v324
    %1499 = vmatpush.msra.mxu0 %v320
    %1500 = vmatpush.msra.mxu0 %v316
    %1501 = vmatpush.msra.mxu0 %v312
    %1502 = vmatpush.msra.mxu0 %v308
    %1503 = vmatpush.msra.mxu0 %v304
    %1504 = vmatpush.msra.mxu0 %v300
    %1505 = vmatmul.f32.gmra.mxu0 %v1460
    %v1506 = vpop.f32.mrf.mxu0
    %v1507 = vadd.f32 0.0, %v1506
    %1508 = vdwg.mxu0
    %1509 = vmatpush.msra.mxu0 %v361
    %1510 = vmatpush.msra.mxu0 %v357
    %1511 = vmatpush.msra.mxu0 %v353
    %1512 = vmatpush.msra.mxu0 %v349
    %1513 = vmatpush.msra.mxu0 %v345
    %1514 = vmatpush.msra.mxu0 %v341
    %1515 = vmatpush.msra.mxu0 %v337
    %1516 = vmatpush.msra.mxu0 %v333
    %1517 = vmatpush.msra.mxu0 %v329
    %1518 = vmatpush.msra.mxu0 %v325
    %1519 = vmatpush.msra.mxu0 %v321
    %1520 = vmatpush.msra.mxu0 %v317
    %1521 = vmatpush.msra.mxu0 %v313
    %1522 = vmatpush.msra.mxu0 %v309
    %1523 = vmatpush.msra.mxu0 %v305
    %1524 = vmatpush.msra.mxu0 %v301
    %1525 = vmatmul.f32.gmra.mxu0 %v1460
    %v1526 = vpop.f32.mrf.mxu0
    %v1527 = vadd.f32 0.0, %v1526
    %1528 = vdwg.mxu0
    %1529 = vmatpush.msra.mxu0 %v362
    %1530 = vmatpush.msra.mxu0 %v358
    %1531 = vmatpush.msra.mxu0 %v354
    %1532 = vmatpush.msra.mxu0 %v350
    %1533 = vmatpush.msra.mxu0 %v346
    %1534 = vmatpush.msra.mxu0 %v342
    %1535 = vmatpush.msra.mxu0 %v338
    %1536 = vmatpush.msra.mxu0 %v334
    %1537 = vmatpush.msra.mxu0 %v330
    %1538 = vmatpush.msra.mxu0 %v326
    %1539 = vmatpush.msra.mxu0 %v322
    %1540 = vmatpush.msra.mxu0 %v318
    %1541 = vmatpush.msra.mxu0 %v314
    %1542 = vmatpush.msra.mxu0 %v310
    %1543 = vmatpush.msra.mxu0 %v306
    %1544 = vmatpush.msra.mxu0 %v302
    %1545 = vmatmul.f32.gmra.mxu0 %v1460
    %v1546 = vpop.f32.mrf.mxu0
    %v1547 = vadd.f32 0.0, %v1546
    %1548 = vdwg.mxu0
    %v1549 = vadd.f32 %v1465, %v1487
    %v1550 = vadd.f32 %v1466, %v1507
    %v1551 = vadd.f32 %v1467, %v1527
    %v1552 = vadd.f32 %v1468, %v1547
    %v1553 = vxor.u32 %v1549, 2147483648
    %v1554 = vmul.f32 %v1553, 1.442695
    %v1555 = vpow.pop %v1554
    %v1556 = vadd.f32 %v1555, 1.0
    %v1557 = vrcp.pop %v1556
    %v1558 = vmul.f32 %v1556, %v1557
    %v1559 = vsub.f32 1.0, %v1558
    %v1560 = vmul.f32 %v1557, %v1559
    %v1561 = vadd.f32 %v1557, %v1560
    %vm1562 = vweird.f32 %v1556
    %vm1563 = vweird.f32 %v1557
    %vm1564 = vmor %vm1562, %vm1563
    %v1565 = vsel %vm1564, %v1557, %v1561
    %v1566 = vand.u32 2147483647, %v1556
    %vm1567 = vcmp.eq.f32.partialorder %v1566, 8.507059e+37
    %v1568 = vand.u32 %v1556, 2147483648
    %v1569 = vor.u32 1.1754944e-38, %v1568
    %v1570 = vsel %vm1567, %v1569, %v1565
    %v1571 = vmul.f32 1.0, %v1570
    %v1572 = vxor.u32 %v1550, 2147483648
    %v1573 = vmul.f32 %v1572, 1.442695
    %v1574 = vpow.pop %v1573
    %v1575 = vadd.f32 %v1574, 1.0
    %v1576 = vrcp.pop %v1575
    %v1577 = vmul.f32 %v1575, %v1576
    %v1578 = vsub.f32 1.0, %v1577
    %v1579 = vmul.f32 %v1576, %v1578
    %v1580 = vadd.f32 %v1576, %v1579
    %vm1581 = vweird.f32 %v1575
    %vm1582 = vweird.f32 %v1576
    %vm1583 = vmor %vm1581, %vm1582
    %v1584 = vsel %vm1583, %v1576, %v1580
    %v1585 = vand.u32 2147483647, %v1575
    %vm1586 = vcmp.eq.f32.partialorder %v1585, 8.507059e+37
    %v1587 = vand.u32 %v1575, 2147483648
    %v1588 = vor.u32 1.1754944e-38, %v1587
    %v1589 = vsel %vm1586, %v1588, %v1584
    %v1590 = vmul.f32 1.0, %v1589
    %v1591 = vtanh.pop %v1551
    %v1592 = vxor.u32 %v1552, 2147483648
    %v1593 = vmul.f32 %v1592, 1.442695
    %v1594 = vpow.pop %v1593
    %v1595 = vadd.f32 %v1594, 1.0
    %v1596 = vrcp.pop %v1595
    %v1597 = vmul.f32 %v1595, %v1596
    %v1598 = vsub.f32 1.0, %v1597
    %v1599 = vmul.f32 %v1596, %v1598
    %v1600 = vadd.f32 %v1596, %v1599
    %vm1601 = vweird.f32 %v1595
    %vm1602 = vweird.f32 %v1596
    %vm1603 = vmor %vm1601, %vm1602
    %v1604 = vsel %vm1603, %v1596, %v1600
    %v1605 = vand.u32 2147483647, %v1595
    %vm1606 = vcmp.eq.f32.partialorder %v1605, 8.507059e+37
    %v1607 = vand.u32 %v1595, 2147483648
    %v1608 = vor.u32 1.1754944e-38, %v1607
    %v1609 = vsel %vm1606, %v1608, %v1604
    %v1610 = vmul.f32 1.0, %v1609
    %v1611 = vmul.f32 %v1590, %v1461
    %v1612 = vmul.f32 %v1571, %v1591
    %v1613 = vadd.f32 %v1611, %v1612
    %v1614 = vtanh.pop %v1613
    %v1615 = vmul.f32 %v1610, %v1614
    %vm1616 = vcmp.gt.s32.totalorder %v298, 0
    %v1617 = vsel %vm1616, %v1615, %v1460
    %1618 = vst [vmem:[%s5] sm:$0xff] %v1617
    // Predicated region
    $region26: #{text_rnn_forward.1} parent=1 // pred_check
      _
    $region27: #{text_rnn_forward.1} parent=1 // pred_check_branch
      %1620 = sbr.rel (0) target = $region29
    $region28: #{text_rnn_forward.1} parent=1 // pred_region
      _
    $region29: #{text_rnn_forward.1} parent=1 // pred_fallthru
      _
    // Predicated region
    $region30: #{text_rnn_forward.1} parent=1 // pred_check
      _
    $region31: #{text_rnn_forward.1} parent=1 // pred_check_branch
      %1622 = sbr.rel (0) target = $region33
    $region32: #{text_rnn_forward.1} parent=1 // pred_region
      _
    $region33: #{text_rnn_forward.1} parent=1 // pred_fallthru
      _
    %1623 = vsyncpa [#allocation4], 1

</llo_original>
